<compile_context>
chip_gen: v5e
topology: v5e:2x2
jax: 0.10.0
libtpu: 0.0.40
codegen_flags: <defaults>
</compile_context>

<pallas_src>
import jax
import jax.numpy as jnp
import numpy as np
from jax import lax
from jax.experimental import pallas as pl
from jax.experimental.pallas import tpu as pltpu

# ---- logical (unpadded) model dims ----------------------------------------
B = 16            # batch
K, D = 8, 32      # num_objs, obj_dim
BDIM = 4          # b_dim (bounding boxes; unused by forward)
S, V, E = 8, 50, 16   # seq_length, vocab size, word-embedding dim
H = 32            # hidden dim (q_dim / num_hid)
C = 16            # number of answer classes

# ---- lane-padded dims (everything feature-like padded to 128 lanes) --------
LANE = 128
V_PAD = ((V + LANE - 1) // LANE) * LANE   # 128
D_PAD = LANE
H_PAD = LANE
C_PAD = LANE

# Batch tile: MXU row width.  256 for v6e/v7x; set 128 on v5e.  For production
# batches on v7x pick it so the grid length is an even number >= 2 so
# dimension_semantics=("parallel",) splits the batch across both TensorCores
# (each TC holds its own ~0.3 MiB copy of the resident weights — trivial).
MAX_B_TILE = 256


def _mm_kernel(q_ref, v_ref,
               embwih_ref, whh_ref, brnn_ref,
               wva_ref, bva_ref,
               wq2_ref, bq2_ref,
               wla_ref, bla_ref,
               wvn_ref, bvn_ref,
               wc_ref, bc_ref,
               logits_ref, vsum_ref, qrepr_ref,
               xp_ref):
    f32 = jnp.float32
    bf16 = jnp.bfloat16
    BT, S_ = q_ref.shape
    K_ = v_ref.shape[0] // BT

    # --- fused embedding + RNN input projection ------------------------------
    # emb @ wih was folded offline, so this is one MXU matmul:
    #   x_proj = one_hot(q) @ (emb @ wih) + b_rnn
    q_ids = q_ref[...]                                            # [BT, S] i32
    iota_v = lax.broadcasted_iota(jnp.int32, (BT, S_, V_PAD), 2)
    one_hot = (q_ids[:, :, None] == iota_v).astype(bf16)          # [BT,S,V_PAD]
    # TODO(synk): at B_TILE>=128 benchmark this one_hot path against a direct
    # VMEM row gather (jnp.take on the resident embwih block) — the iota +
    # compare + cast becomes the largest VALU consumer while the MXU has slack.
    x_proj = (jnp.dot(one_hot.reshape(BT * S_, V_PAD), embwih_ref[...],
                      preferred_element_type=f32)
              + brnn_ref[...]).reshape(BT, S_, H_PAD)             # [BT,S,H_PAD]

    # Stage per-step slices in VMEM scratch: bounds live ranges so only h and
    # one [BT,H_PAD] slice are live inside the recurrence (no vreg spills when
    # B_TILE is raised to 128-256).
    for t in range(S_):                       # static stores
        xp_ref[t] = x_proj[:, t, :]

    # --- q_emb: tanh RNN; only h @ whh is serial ------------------------------
    def rnn_step(t, h):
        return jnp.tanh(xp_ref[t]
                        + jnp.dot(h.astype(bf16), whh_ref[...],
                                  preferred_element_type=f32))
    q_emb = lax.fori_loop(0, S_, rnn_step,
                          jnp.zeros((BT, H_PAD), f32), unroll=True)  # [BT,H_PAD]

    # --- fused q-side projections: [wqa | wqn] in one 256-wide MXU pass -------
    qq = jnp.maximum(
        jnp.dot(q_emb.astype(bf16), wq2_ref[...],
                preferred_element_type=f32) + bq2_ref[...], 0.0)  # [BT,2*H_PAD]
    q_proj = qq[:, :H_PAD]                                        # v_att q-proj
    q_repr = qq[:, H_PAD:]                                        # q_net output

    # --- v_att: top-down attention, softmax over the K objects ----------------
    v_flat = v_ref[...]                                           # [BT*K,D_PAD]
    v_proj = jnp.maximum(
        jnp.dot(v_flat.astype(bf16), wva_ref[...],
                preferred_element_type=f32) + bva_ref[...], 0.0)  # [BT*K,H_PAD]
    v_proj3 = v_proj.reshape(BT, K_, H_PAD)
    # Fold wla ([H,1] -> lane row) into q_proj once instead of into the full
    # [BT,K,H_PAD] joint tensor: drops a BT*K*128 VPU pass to a BT*128 one.
    q_scaled = q_proj * wla_ref[...]                              # [BT, H_PAD]
    att_logits = (jnp.sum(v_proj3 * q_scaled[:, None, :], axis=-1)
                  + bla_ref[0, 0])                                # [BT, K]
    m = jnp.max(att_logits, axis=1, keepdims=True)
    e = jnp.exp(att_logits - m)
    att = e * pl.reciprocal(jnp.sum(e, axis=1, keepdims=True), approx=True)

    # --- v_emb = (att * v).sum(1) ----------------------------------------------
    v3d = v_flat.reshape(BT, K_, D_PAD)
    v_emb = jnp.sum(att[:, :, None] * v3d, axis=1)                # [BT, D_PAD]

    # --- v_net, joint repr, classifier_All -------------------------------------
    v_repr = jnp.maximum(
        jnp.dot(v_emb.astype(bf16), wvn_ref[...],
                preferred_element_type=f32) + bvn_ref[...], 0.0)  # [BT, H_PAD]
    joint_repr = q_repr * v_repr
    logits_all = (jnp.dot(joint_repr.astype(bf16), wc_ref[...],
                          preferred_element_type=f32) + bc_ref[...])  # [BT,C_PAD]

    # lane-dense stores (128-wide, no masked vst)
    logits_ref[...] = logits_all
    vsum_ref[...] = jnp.sum(v3d, axis=1)                          # v.sum(1)
    qrepr_ref[...] = q_repr


# ----------------------------- parameters -----------------------------------
def init_params(key):
    """Unpadded f32 parameters (the 'module' weights)."""
    ks = jax.random.split(key, 16)
    s = 0.1
    f = jnp.float32
    r = lambda k, shape: jax.random.normal(k, shape, f) * s
    return dict(
        emb=r(ks[0], (V, E)),
        # q_emb: single-layer tanh RNN
        wih=r(ks[1], (E, H)), whh=r(ks[2], (H, H)), brnn=r(ks[3], (1, H)),
        # v_att
        wva=r(ks[4], (D, H)), bva=r(ks[5], (1, H)),
        wqa=r(ks[6], (H, H)), bqa=r(ks[7], (1, H)),
        wla=r(ks[8], (H, 1)), bla=r(ks[9], (1, 1)),
        # q_net / v_net (FCNet = Linear + ReLU)
        wqn=r(ks[10], (H, H)), bqn=r(ks[11], (1, H)),
        wvn=r(ks[12], (D, H)), bvn=r(ks[13], (1, H)),
        # classifier_All
        wc=r(ks[14], (H, C)), bc=r(ks[15], (1, C)),
    )


def _pad2(w, rows, cols):
    return jnp.pad(w, ((0, rows - w.shape[0]), (0, cols - w.shape[1])))


def prep_kernel_params(p):
    """Offline algebraic folds + lane-pad to 128 + bf16 cast for MXU weights."""
    bf16, f32 = jnp.bfloat16, jnp.float32
    # Fold: (one_hot @ emb) @ wih == one_hot @ (emb @ wih)
    embwih = p["emb"] @ p["wih"]                                  # [V, H] f32
    # Fuse q-side weights: one [H_PAD, 2*H_PAD] matmul -> split q_proj | q_repr
    wq2 = jnp.concatenate([_pad2(p["wqa"], H_PAD, H_PAD),
                           _pad2(p["wqn"], H_PAD, H_PAD)], axis=1)
    bq2 = jnp.concatenate([_pad2(p["bqa"], 1, H_PAD),
                           _pad2(p["bqn"], 1, H_PAD)], axis=1)
    return dict(
        embwih=_pad2(embwih, V_PAD, H_PAD).astype(bf16),
        whh=_pad2(p["whh"], H_PAD, H_PAD).astype(bf16),
        brnn=_pad2(p["brnn"], 1, H_PAD).astype(f32),
        wva=_pad2(p["wva"], D_PAD, H_PAD).astype(bf16),
        bva=_pad2(p["bva"], 1, H_PAD).astype(f32),
        wq2=wq2.astype(bf16), bq2=bq2.astype(f32),
        wla=_pad2(p["wla"].T, 1, H_PAD).astype(f32),   # [H,1] -> [1,H_PAD] row
        bla=p["bla"].astype(f32),                      # (1,1) scalar -> SMEM
        wvn=_pad2(p["wvn"], D_PAD, H_PAD).astype(bf16),
        bvn=_pad2(p["bvn"], 1, H_PAD).astype(f32),
        wc=_pad2(p["wc"], H_PAD, C_PAD).astype(bf16),
        bc=_pad2(p["bc"], 1, C_PAD).astype(f32),
    )


def _pick_b_tile(batch):
    """Largest batch tile <= MAX_B_TILE that divides the batch (multiples of 8
    sublanes).  For the B=16 test shape this gives B_TILE=16 -> grid=(1,)."""
    assert batch % 8 == 0, "batch must be a multiple of 8"
    for bt in range(min(batch, MAX_B_TILE), 0, -8):
        if batch % bt == 0:
            return bt
    raise ValueError("no valid batch tile")


# ----------------------------- forward wrapper ------------------------------
def multimodal_forward(v, b, q, labels, kp):
    """Mirrors MultiModalModel.forward(v, b, q, labels).
    Returns (logits_all [B,C], v.sum(1) [B,D], q_repr [B,H])."""
    del b, labels
    batch = v.shape[0]
    b_tile = _pick_b_tile(batch)
    grid = (batch // b_tile,)

    # Layout plumbing in the wrapper: lane-pad object features and flatten
    # (batch, K) so the kernel never reshapes across (8,128) tile boundaries.
    v_flat = jnp.pad(v, ((0, 0), (0, 0), (0, D_PAD - D))).reshape(batch * K, D_PAD)

    # Resident weights: constant (0,0) index across all grid steps.
    # NOTE: if H/D scale up, mark these with pipeline_mode=pl.Buffered(1) so
    # they are not double-buffered (matters most under v7x's 32 MiB scoped VMEM).
    w2 = lambda shape: pl.BlockSpec(shape, lambda i: (0, 0))

    in_specs = [
        pl.BlockSpec((b_tile, S), lambda i: (i, 0)),            # q token ids
        pl.BlockSpec((b_tile * K, D_PAD), lambda i: (i, 0)),    # v (flattened)
        w2((V_PAD, H_PAD)),                                     # emb @ wih
        w2((H_PAD, H_PAD)), w2((1, H_PAD)),                     # whh, brnn
        w2((D_PAD, H_PAD)), w2((1, H_PAD)),                     # wva, bva
        w2((H_PAD, 2 * H_PAD)), w2((1, 2 * H_PAD)),             # [wqa|wqn], bias
        w2((1, H_PAD)),                                         # wla (row)
        pl.BlockSpec((1, 1), lambda i: (0, 0),
                     memory_space=pltpu.MemorySpace.SMEM),      # bla scalar
        w2((D_PAD, H_PAD)), w2((1, H_PAD)),                     # wvn, bvn
        w2((H_PAD, C_PAD)), w2((1, C_PAD)),                     # wc, bc
    ]
    out_specs = (
        pl.BlockSpec((b_tile, C_PAD), lambda i: (i, 0)),
        pl.BlockSpec((b_tile, D_PAD), lambda i: (i, 0)),
        pl.BlockSpec((b_tile, H_PAD), lambda i: (i, 0)),
    )
    out_shape = (
        jax.ShapeDtypeStruct((batch, C_PAD), jnp.float32),
        jax.ShapeDtypeStruct((batch, D_PAD), jnp.float32),
        jax.ShapeDtypeStruct((batch, H_PAD), jnp.float32),
    )
    # Per-step activations at B_TILE=256 (one_hot ~0.5 MiB, x_proj ~1 MiB,
    # v ~1 MiB, outputs <0.5 MiB, double-buffered) stay well under even v7x's
    # 32 MiB scoped default — no need to shrink tiles; set vmem_limit_bytes
    # only if B_TILE is pushed past ~512 on v5e.
    scratch_shapes = [pltpu.VMEM((S, b_tile, H_PAD), jnp.float32)]  # x_proj stage

    logits_p, vsum_p, qrepr_p = pl.pallas_call(
        _mm_kernel,
        out_shape=out_shape,
        grid=grid,
        in_specs=in_specs,
        out_specs=out_specs,
        scratch_shapes=scratch_shapes,
        compiler_params=pltpu.CompilerParams(
            dimension_semantics=("parallel",)),
    )(q, v_flat,
      kp["embwih"], kp["whh"], kp["brnn"],
      kp["wva"], kp["bva"], kp["wq2"], kp["bq2"],
      kp["wla"], kp["bla"],
      kp["wvn"], kp["bvn"], kp["wc"], kp["bc"])

    # slice off the lane padding
    return logits_p[:, :C], vsum_p[:, :D], qrepr_p[:, :H]


# ----------------------------- pure-JAX reference ----------------------------
def reference_forward(v, b, q, labels, p):
    del b, labels
    bs = v.shape[0]
    w_emb = jnp.take(p["emb"], q, axis=0)                        # [B, S, E]
    h = jnp.zeros((bs, H), jnp.float32)
    for t in range(S):
        h = jnp.tanh(w_emb[:, t, :] @ p["wih"] + h @ p["whh"] + p["brnn"])
    q_emb = h
    v_proj = jax.nn.relu(v.reshape(-1, D) @ p["wva"] + p["bva"]).reshape(bs, K, H)
    q_proj = jax.nn.relu(q_emb @ p["wqa"] + p["bqa"])
    joint = v_proj * q_proj[:, None, :]
    att_logits = (joint.reshape(-1, H) @ p["wla"] + p["bla"]).reshape(bs, K)
    att = jax.nn.softmax(att_logits, axis=1)
    v_emb = jnp.sum(att[:, :, None] * v, axis=1)
    q_repr = jax.nn.relu(q_emb @ p["wqn"] + p["bqn"])
    v_repr = jax.nn.relu(v_emb @ p["wvn"] + p["bvn"])
    logits_all = (q_repr * v_repr) @ p["wc"] + p["bc"]
    return logits_all, v.sum(axis=1), q_repr


if __name__ == "__main__":
    key = jax.random.PRNGKey(0)
    kparam, kv, kb, kq = jax.random.split(key, 4)
    raw_params = init_params(kparam)
    kernel_params = prep_kernel_params(raw_params)

    v = jax.random.normal(kv, (B, K, D), jnp.float32)
    b = jax.random.normal(kb, (B, K, BDIM), jnp.float32)   # unused by forward
    q = jax.random.randint(kq, (B, S), 0, V, jnp.int32)
    labels = jnp.zeros((B, C), jnp.float32)                # unused by forward

    outs = jax.block_until_ready(multimodal_forward(v, b, q, labels, kernel_params))
    refs = reference_forward(v, b, q, labels, raw_params)

    # Kernel uses bf16 MXU matmuls (f32 accumulation) + approx reciprocal in
    # the softmax; compare against the f32 reference with a bf16 tolerance.
    for o, r in zip(outs, refs):
        np.testing.assert_allclose(np.asarray(o), np.asarray(r),
                                   rtol=2e-2, atol=2e-2)
    print("KERNEL_OK")
</pallas_src>

<mosaic_0001>
module attributes {stable_mosaic.version = 11 : i64} {
  func.func @_mm_kernel(%arg0: i32, %arg1: memref<16x8xi32, #tpu.memory_space<vmem>>, %arg2: memref<128x128xf32, #tpu.memory_space<vmem>>, %arg3: memref<128x128xbf16, #tpu.memory_space<vmem>>, %arg4: memref<128x128xbf16, #tpu.memory_space<vmem>>, %arg5: memref<1x128xf32, #tpu.memory_space<vmem>>, %arg6: memref<128x128xbf16, #tpu.memory_space<vmem>>, %arg7: memref<1x128xf32, #tpu.memory_space<vmem>>, %arg8: memref<128x256xbf16, #tpu.memory_space<vmem>>, %arg9: memref<1x256xf32, #tpu.memory_space<vmem>>, %arg10: memref<1x128xf32, #tpu.memory_space<vmem>>, %arg11: memref<1x1xf32, #tpu.memory_space<smem>>, %arg12: memref<128x128xbf16, #tpu.memory_space<vmem>>, %arg13: memref<1x128xf32, #tpu.memory_space<vmem>>, %arg14: memref<128x128xbf16, #tpu.memory_space<vmem>>, %arg15: memref<1x128xf32, #tpu.memory_space<vmem>>, %arg16: memref<16x128xf32, #tpu.memory_space<vmem>>, %arg17: memref<16x128xf32, #tpu.memory_space<vmem>>, %arg18: memref<16x128xf32, #tpu.memory_space<vmem>>, %arg19: memref<8x16x128xf32, #tpu.memory_space<vmem>>) attributes {dimension_semantics = [#tpu.dimension_semantics<parallel>], iteration_bounds = array<i64: 1>, scalar_prefetch = 0 : i64, scratch_operands = 1 : i64, tpu.core_type = #tpu.core_type<tc>, window_params = [{transform_indices = @transform_0, window_bounds = array<i64: 16, 8>}, {transform_indices = @transform_1, window_bounds = array<i64: 128, 128>}, {pipeline_mode = #tpu.pipeline_mode<synchronous>, transform_indices = @transform_2, window_bounds = array<i64: 128, 128>}, {pipeline_mode = #tpu.pipeline_mode<synchronous>, transform_indices = @transform_3, window_bounds = array<i64: 128, 128>}, {pipeline_mode = #tpu.pipeline_mode<synchronous>, transform_indices = @transform_4, window_bounds = array<i64: 1, 128>}, {pipeline_mode = #tpu.pipeline_mode<synchronous>, transform_indices = @transform_5, window_bounds = array<i64: 128, 128>}, {pipeline_mode = #tpu.pipeline_mode<synchronous>, transform_indices = @transform_6, window_bounds = array<i64: 1, 128>}, {pipeline_mode = #tpu.pipeline_mode<synchronous>, transform_indices = @transform_7, window_bounds = array<i64: 128, 256>}, {pipeline_mode = #tpu.pipeline_mode<synchronous>, transform_indices = @transform_8, window_bounds = array<i64: 1, 256>}, {pipeline_mode = #tpu.pipeline_mode<synchronous>, transform_indices = @transform_9, window_bounds = array<i64: 1, 128>}, {transform_indices = @transform_10, window_bounds = array<i64: 1, 1>}, {pipeline_mode = #tpu.pipeline_mode<synchronous>, transform_indices = @transform_11, window_bounds = array<i64: 128, 128>}, {pipeline_mode = #tpu.pipeline_mode<synchronous>, transform_indices = @transform_12, window_bounds = array<i64: 1, 128>}, {pipeline_mode = #tpu.pipeline_mode<synchronous>, transform_indices = @transform_13, window_bounds = array<i64: 128, 128>}, {pipeline_mode = #tpu.pipeline_mode<synchronous>, transform_indices = @transform_14, window_bounds = array<i64: 1, 128>}, {transform_indices = @transform_15, window_bounds = array<i64: 16, 128>}, {transform_indices = @transform_16, window_bounds = array<i64: 16, 128>}, {transform_indices = @transform_17, window_bounds = array<i64: 16, 128>}]} {
    %c0 = arith.constant 0 : index
    %c0_0 = arith.constant 0 : index
    %0 = vector.load %arg1[%c0, %c0_0] : memref<16x8xi32, #tpu.memory_space<vmem>>, vector<16x8xi32>
    %1 = tpu.iota {dimensions = array<i32: 2>} : vector<16x8x128xi32>
    %2 = vector.shape_cast %0 : vector<16x8xi32> to vector<16x8x1xi32>
    %3 = vector.broadcast %2 : vector<16x8x1xi32> to vector<16x8x128xi32>
    %4 = arith.cmpi eq, %3, %1 : vector<16x8x128xi32>
    %5 = arith.extui %4 : vector<16x8x128xi1> to vector<16x8x128xi32>
    %6 = arith.sitofp %5 : vector<16x8x128xi32> to vector<16x8x128xf32>
    %7 = arith.truncf %6 : vector<16x8x128xf32> to vector<16x8x128xbf16>
    %8 = vector.shape_cast %7 : vector<16x8x128xbf16> to vector<128x128xbf16>
    %c0_1 = arith.constant 0 : index
    %c0_2 = arith.constant 0 : index
    %9 = vector.load %arg3[%c0_1, %c0_2] : memref<128x128xbf16, #tpu.memory_space<vmem>>, vector<128x128xbf16>
    %cst = arith.constant dense<0.000000e+00> : vector<128x128xf32>
    %10 = tpu.matmul %8, %9, %cst {dimension_numbers = #tpu.dot_dimension_numbers<[1], [0], [0], [1], [0, 0, 1, 1], [], []>} : vector<128x128xbf16>, vector<128x128xbf16>, vector<128x128xf32> -> vector<128x128xf32>
    %c0_3 = arith.constant 0 : index
    %c0_4 = arith.constant 0 : index
    %11 = vector.load %arg5[%c0_3, %c0_4] : memref<1x128xf32, #tpu.memory_space<vmem>>, vector<1x128xf32>
    %12 = vector.broadcast %11 : vector<1x128xf32> to vector<128x128xf32>
    %13 = arith.addf %10, %12 : vector<128x128xf32>
    %14 = vector.shape_cast %13 : vector<128x128xf32> to vector<16x8x128xf32>
    %15 = vector.extract_strided_slice %14 {offsets = [0, 0, 0], sizes = [16, 1, 128], strides = [1, 1, 1]} : vector<16x8x128xf32> to vector<16x1x128xf32>
    %16 = vector.shape_cast %15 : vector<16x1x128xf32> to vector<16x128xf32>
    %c0_5 = arith.constant 0 : index
    %c0_6 = arith.constant 0 : index
    %c0_7 = arith.constant 0 : index
    %17 = vector.load %arg19[%c0_5, %c0_6, %c0_7] : memref<8x16x128xf32, #tpu.memory_space<vmem>>, vector<1x16x128xf32>
    %18 = vector.shape_cast %17 : vector<1x16x128xf32> to vector<16x128xf32>
    %19 = vector.shape_cast %16 : vector<16x128xf32> to vector<1x16x128xf32>
    tpu.vector_store %arg19[%c0_5, %c0_6, %c0_7], %19 {strides = array<i32>} : memref<8x16x128xf32, #tpu.memory_space<vmem>>, vector<1x16x128xf32>,
    %20 = vector.extract_strided_slice %14 {offsets = [0, 1, 0], sizes = [16, 1, 128], strides = [1, 1, 1]} : vector<16x8x128xf32> to vector<16x1x128xf32>
    %21 = vector.shape_cast %20 : vector<16x1x128xf32> to vector<16x128xf32>
    %c1 = arith.constant 1 : index
    %c0_8 = arith.constant 0 : index
    %c0_9 = arith.constant 0 : index
    %22 = vector.load %arg19[%c1, %c0_8, %c0_9] : memref<8x16x128xf32, #tpu.memory_space<vmem>>, vector<1x16x128xf32>
    %23 = vector.shape_cast %22 : vector<1x16x128xf32> to vector<16x128xf32>
    %24 = vector.shape_cast %21 : vector<16x128xf32> to vector<1x16x128xf32>
    tpu.vector_store %arg19[%c1, %c0_8, %c0_9], %24 {strides = array<i32>} : memref<8x16x128xf32, #tpu.memory_space<vmem>>, vector<1x16x128xf32>,
    %25 = vector.extract_strided_slice %14 {offsets = [0, 2, 0], sizes = [16, 1, 128], strides = [1, 1, 1]} : vector<16x8x128xf32> to vector<16x1x128xf32>
    %26 = vector.shape_cast %25 : vector<16x1x128xf32> to vector<16x128xf32>
    %c2 = arith.constant 2 : index
    %c0_10 = arith.constant 0 : index
    %c0_11 = arith.constant 0 : index
    %27 = vector.load %arg19[%c2, %c0_10, %c0_11] : memref<8x16x128xf32, #tpu.memory_space<vmem>>, vector<1x16x128xf32>
    %28 = vector.shape_cast %27 : vector<1x16x128xf32> to vector<16x128xf32>
    %29 = vector.shape_cast %26 : vector<16x128xf32> to vector<1x16x128xf32>
    tpu.vector_store %arg19[%c2, %c0_10, %c0_11], %29 {strides = array<i32>} : memref<8x16x128xf32, #tpu.memory_space<vmem>>, vector<1x16x128xf32>,
    %30 = vector.extract_strided_slice %14 {offsets = [0, 3, 0], sizes = [16, 1, 128], strides = [1, 1, 1]} : vector<16x8x128xf32> to vector<16x1x128xf32>
    %31 = vector.shape_cast %30 : vector<16x1x128xf32> to vector<16x128xf32>
    %c3 = arith.constant 3 : index
    %c0_12 = arith.constant 0 : index
    %c0_13 = arith.constant 0 : index
    %32 = vector.load %arg19[%c3, %c0_12, %c0_13] : memref<8x16x128xf32, #tpu.memory_space<vmem>>, vector<1x16x128xf32>
    %33 = vector.shape_cast %32 : vector<1x16x128xf32> to vector<16x128xf32>
    %34 = vector.shape_cast %31 : vector<16x128xf32> to vector<1x16x128xf32>
    tpu.vector_store %arg19[%c3, %c0_12, %c0_13], %34 {strides = array<i32>} : memref<8x16x128xf32, #tpu.memory_space<vmem>>, vector<1x16x128xf32>,
    %35 = vector.extract_strided_slice %14 {offsets = [0, 4, 0], sizes = [16, 1, 128], strides = [1, 1, 1]} : vector<16x8x128xf32> to vector<16x1x128xf32>
    %36 = vector.shape_cast %35 : vector<16x1x128xf32> to vector<16x128xf32>
    %c4 = arith.constant 4 : index
    %c0_14 = arith.constant 0 : index
    %c0_15 = arith.constant 0 : index
    %37 = vector.load %arg19[%c4, %c0_14, %c0_15] : memref<8x16x128xf32, #tpu.memory_space<vmem>>, vector<1x16x128xf32>
    %38 = vector.shape_cast %37 : vector<1x16x128xf32> to vector<16x128xf32>
    %39 = vector.shape_cast %36 : vector<16x128xf32> to vector<1x16x128xf32>
    tpu.vector_store %arg19[%c4, %c0_14, %c0_15], %39 {strides = array<i32>} : memref<8x16x128xf32, #tpu.memory_space<vmem>>, vector<1x16x128xf32>,
    %40 = vector.extract_strided_slice %14 {offsets = [0, 5, 0], sizes = [16, 1, 128], strides = [1, 1, 1]} : vector<16x8x128xf32> to vector<16x1x128xf32>
    %41 = vector.shape_cast %40 : vector<16x1x128xf32> to vector<16x128xf32>
    %c5 = arith.constant 5 : index
    %c0_16 = arith.constant 0 : index
    %c0_17 = arith.constant 0 : index
    %42 = vector.load %arg19[%c5, %c0_16, %c0_17] : memref<8x16x128xf32, #tpu.memory_space<vmem>>, vector<1x16x128xf32>
    %43 = vector.shape_cast %42 : vector<1x16x128xf32> to vector<16x128xf32>
    %44 = vector.shape_cast %41 : vector<16x128xf32> to vector<1x16x128xf32>
    tpu.vector_store %arg19[%c5, %c0_16, %c0_17], %44 {strides = array<i32>} : memref<8x16x128xf32, #tpu.memory_space<vmem>>, vector<1x16x128xf32>,
    %45 = vector.extract_strided_slice %14 {offsets = [0, 6, 0], sizes = [16, 1, 128], strides = [1, 1, 1]} : vector<16x8x128xf32> to vector<16x1x128xf32>
    %46 = vector.shape_cast %45 : vector<16x1x128xf32> to vector<16x128xf32>
    %c6 = arith.constant 6 : index
    %c0_18 = arith.constant 0 : index
    %c0_19 = arith.constant 0 : index
    %47 = vector.load %arg19[%c6, %c0_18, %c0_19] : memref<8x16x128xf32, #tpu.memory_space<vmem>>, vector<1x16x128xf32>
    %48 = vector.shape_cast %47 : vector<1x16x128xf32> to vector<16x128xf32>
    %49 = vector.shape_cast %46 : vector<16x128xf32> to vector<1x16x128xf32>
    tpu.vector_store %arg19[%c6, %c0_18, %c0_19], %49 {strides = array<i32>} : memref<8x16x128xf32, #tpu.memory_space<vmem>>, vector<1x16x128xf32>,
    %50 = vector.extract_strided_slice %14 {offsets = [0, 7, 0], sizes = [16, 1, 128], strides = [1, 1, 1]} : vector<16x8x128xf32> to vector<16x1x128xf32>
    %51 = vector.shape_cast %50 : vector<16x1x128xf32> to vector<16x128xf32>
    %c7 = arith.constant 7 : index
    %c0_20 = arith.constant 0 : index
    %c0_21 = arith.constant 0 : index
    %52 = vector.load %arg19[%c7, %c0_20, %c0_21] : memref<8x16x128xf32, #tpu.memory_space<vmem>>, vector<1x16x128xf32>
    %53 = vector.shape_cast %52 : vector<1x16x128xf32> to vector<16x128xf32>
    %54 = vector.shape_cast %51 : vector<16x128xf32> to vector<1x16x128xf32>
    tpu.vector_store %arg19[%c7, %c0_20, %c0_21], %54 {strides = array<i32>} : memref<8x16x128xf32, #tpu.memory_space<vmem>>, vector<1x16x128xf32>,
    %cst_22 = arith.constant 0.000000e+00 : f32
    %55 = vector.broadcast %cst_22 : f32 to vector<16x128xf32>
    %c0_i32 = arith.constant 0 : i32
    %56 = arith.index_cast %c0_i32 : i32 to index
    %c0_23 = arith.constant 0 : index
    %c0_24 = arith.constant 0 : index
    %57 = vector.load %arg19[%56, %c0_23, %c0_24] : memref<8x16x128xf32, #tpu.memory_space<vmem>>, vector<1x16x128xf32>
    %58 = vector.shape_cast %57 : vector<1x16x128xf32> to vector<16x128xf32>
    %59 = arith.truncf %55 : vector<16x128xf32> to vector<16x128xbf16>
    %c0_25 = arith.constant 0 : index
    %c0_26 = arith.constant 0 : index
    %60 = vector.load %arg4[%c0_25, %c0_26] : memref<128x128xbf16, #tpu.memory_space<vmem>>, vector<128x128xbf16>
    %cst_27 = arith.constant dense<0.000000e+00> : vector<16x128xf32>
    %61 = tpu.matmul %59, %60, %cst_27 {dimension_numbers = #tpu.dot_dimension_numbers<[1], [0], [0], [1], [0, 0, 1, 1], [], []>} : vector<16x128xbf16>, vector<128x128xbf16>, vector<16x128xf32> -> vector<16x128xf32>
    %62 = arith.addf %58, %61 : vector<16x128xf32>
    %63 = math.tanh %62 : vector<16x128xf32>
    %c1_i32 = arith.constant 1 : i32
    %64 = arith.index_cast %c1_i32 : i32 to index
    %c0_28 = arith.constant 0 : index
    %c0_29 = arith.constant 0 : index
    %65 = vector.load %arg19[%64, %c0_28, %c0_29] : memref<8x16x128xf32, #tpu.memory_space<vmem>>, vector<1x16x128xf32>
    %66 = vector.shape_cast %65 : vector<1x16x128xf32> to vector<16x128xf32>
    %67 = arith.truncf %63 : vector<16x128xf32> to vector<16x128xbf16>
    %c0_30 = arith.constant 0 : index
    %c0_31 = arith.constant 0 : index
    %68 = vector.load %arg4[%c0_30, %c0_31] : memref<128x128xbf16, #tpu.memory_space<vmem>>, vector<128x128xbf16>
    %cst_32 = arith.constant dense<0.000000e+00> : vector<16x128xf32>
    %69 = tpu.matmul %67, %68, %cst_32 {dimension_numbers = #tpu.dot_dimension_numbers<[1], [0], [0], [1], [0, 0, 1, 1], [], []>} : vector<16x128xbf16>, vector<128x128xbf16>, vector<16x128xf32> -> vector<16x128xf32>
    %70 = arith.addf %66, %69 : vector<16x128xf32>
    %71 = math.tanh %70 : vector<16x128xf32>
    %c2_i32 = arith.constant 2 : i32
    %72 = arith.index_cast %c2_i32 : i32 to index
    %c0_33 = arith.constant 0 : index
    %c0_34 = arith.constant 0 : index
    %73 = vector.load %arg19[%72, %c0_33, %c0_34] : memref<8x16x128xf32, #tpu.memory_space<vmem>>, vector<1x16x128xf32>
    %74 = vector.shape_cast %73 : vector<1x16x128xf32> to vector<16x128xf32>
    %75 = arith.truncf %71 : vector<16x128xf32> to vector<16x128xbf16>
    %c0_35 = arith.constant 0 : index
    %c0_36 = arith.constant 0 : index
    %76 = vector.load %arg4[%c0_35, %c0_36] : memref<128x128xbf16, #tpu.memory_space<vmem>>, vector<128x128xbf16>
    %cst_37 = arith.constant dense<0.000000e+00> : vector<16x128xf32>
    %77 = tpu.matmul %75, %76, %cst_37 {dimension_numbers = #tpu.dot_dimension_numbers<[1], [0], [0], [1], [0, 0, 1, 1], [], []>} : vector<16x128xbf16>, vector<128x128xbf16>, vector<16x128xf32> -> vector<16x128xf32>
    %78 = arith.addf %74, %77 : vector<16x128xf32>
    %79 = math.tanh %78 : vector<16x128xf32>
    %c3_i32 = arith.constant 3 : i32
    %80 = arith.index_cast %c3_i32 : i32 to index
    %c0_38 = arith.constant 0 : index
    %c0_39 = arith.constant 0 : index
    %81 = vector.load %arg19[%80, %c0_38, %c0_39] : memref<8x16x128xf32, #tpu.memory_space<vmem>>, vector<1x16x128xf32>
    %82 = vector.shape_cast %81 : vector<1x16x128xf32> to vector<16x128xf32>
    %83 = arith.truncf %79 : vector<16x128xf32> to vector<16x128xbf16>
    %c0_40 = arith.constant 0 : index
    %c0_41 = arith.constant 0 : index
    %84 = vector.load %arg4[%c0_40, %c0_41] : memref<128x128xbf16, #tpu.memory_space<vmem>>, vector<128x128xbf16>
    %cst_42 = arith.constant dense<0.000000e+00> : vector<16x128xf32>
    %85 = tpu.matmul %83, %84, %cst_42 {dimension_numbers = #tpu.dot_dimension_numbers<[1], [0], [0], [1], [0, 0, 1, 1], [], []>} : vector<16x128xbf16>, vector<128x128xbf16>, vector<16x128xf32> -> vector<16x128xf32>
    %86 = arith.addf %82, %85 : vector<16x128xf32>
    %87 = math.tanh %86 : vector<16x128xf32>
    %c4_i32 = arith.constant 4 : i32
    %88 = arith.index_cast %c4_i32 : i32 to index
    %c0_43 = arith.constant 0 : index
    %c0_44 = arith.constant 0 : index
    %89 = vector.load %arg19[%88, %c0_43, %c0_44] : memref<8x16x128xf32, #tpu.memory_space<vmem>>, vector<1x16x128xf32>
    %90 = vector.shape_cast %89 : vector<1x16x128xf32> to vector<16x128xf32>
    %91 = arith.truncf %87 : vector<16x128xf32> to vector<16x128xbf16>
    %c0_45 = arith.constant 0 : index
    %c0_46 = arith.constant 0 : index
    %92 = vector.load %arg4[%c0_45, %c0_46] : memref<128x128xbf16, #tpu.memory_space<vmem>>, vector<128x128xbf16>
    %cst_47 = arith.constant dense<0.000000e+00> : vector<16x128xf32>
    %93 = tpu.matmul %91, %92, %cst_47 {dimension_numbers = #tpu.dot_dimension_numbers<[1], [0], [0], [1], [0, 0, 1, 1], [], []>} : vector<16x128xbf16>, vector<128x128xbf16>, vector<16x128xf32> -> vector<16x128xf32>
    %94 = arith.addf %90, %93 : vector<16x128xf32>
    %95 = math.tanh %94 : vector<16x128xf32>
    %c5_i32 = arith.constant 5 : i32
    %96 = arith.index_cast %c5_i32 : i32 to index
    %c0_48 = arith.constant 0 : index
    %c0_49 = arith.constant 0 : index
    %97 = vector.load %arg19[%96, %c0_48, %c0_49] : memref<8x16x128xf32, #tpu.memory_space<vmem>>, vector<1x16x128xf32>
    %98 = vector.shape_cast %97 : vector<1x16x128xf32> to vector<16x128xf32>
    %99 = arith.truncf %95 : vector<16x128xf32> to vector<16x128xbf16>
    %c0_50 = arith.constant 0 : index
    %c0_51 = arith.constant 0 : index
    %100 = vector.load %arg4[%c0_50, %c0_51] : memref<128x128xbf16, #tpu.memory_space<vmem>>, vector<128x128xbf16>
    %cst_52 = arith.constant dense<0.000000e+00> : vector<16x128xf32>
    %101 = tpu.matmul %99, %100, %cst_52 {dimension_numbers = #tpu.dot_dimension_numbers<[1], [0], [0], [1], [0, 0, 1, 1], [], []>} : vector<16x128xbf16>, vector<128x128xbf16>, vector<16x128xf32> -> vector<16x128xf32>
    %102 = arith.addf %98, %101 : vector<16x128xf32>
    %103 = math.tanh %102 : vector<16x128xf32>
    %c6_i32 = arith.constant 6 : i32
    %104 = arith.index_cast %c6_i32 : i32 to index
    %c0_53 = arith.constant 0 : index
    %c0_54 = arith.constant 0 : index
    %105 = vector.load %arg19[%104, %c0_53, %c0_54] : memref<8x16x128xf32, #tpu.memory_space<vmem>>, vector<1x16x128xf32>
    %106 = vector.shape_cast %105 : vector<1x16x128xf32> to vector<16x128xf32>
    %107 = arith.truncf %103 : vector<16x128xf32> to vector<16x128xbf16>
    %c0_55 = arith.constant 0 : index
    %c0_56 = arith.constant 0 : index
    %108 = vector.load %arg4[%c0_55, %c0_56] : memref<128x128xbf16, #tpu.memory_space<vmem>>, vector<128x128xbf16>
    %cst_57 = arith.constant dense<0.000000e+00> : vector<16x128xf32>
    %109 = tpu.matmul %107, %108, %cst_57 {dimension_numbers = #tpu.dot_dimension_numbers<[1], [0], [0], [1], [0, 0, 1, 1], [], []>} : vector<16x128xbf16>, vector<128x128xbf16>, vector<16x128xf32> -> vector<16x128xf32>
    %110 = arith.addf %106, %109 : vector<16x128xf32>
    %111 = math.tanh %110 : vector<16x128xf32>
    %c7_i32 = arith.constant 7 : i32
    %112 = arith.index_cast %c7_i32 : i32 to index
    %c0_58 = arith.constant 0 : index
    %c0_59 = arith.constant 0 : index
    %113 = vector.load %arg19[%112, %c0_58, %c0_59] : memref<8x16x128xf32, #tpu.memory_space<vmem>>, vector<1x16x128xf32>
    %114 = vector.shape_cast %113 : vector<1x16x128xf32> to vector<16x128xf32>
    %115 = arith.truncf %111 : vector<16x128xf32> to vector<16x128xbf16>
    %c0_60 = arith.constant 0 : index
    %c0_61 = arith.constant 0 : index
    %116 = vector.load %arg4[%c0_60, %c0_61] : memref<128x128xbf16, #tpu.memory_space<vmem>>, vector<128x128xbf16>
    %cst_62 = arith.constant dense<0.000000e+00> : vector<16x128xf32>
    %117 = tpu.matmul %115, %116, %cst_62 {dimension_numbers = #tpu.dot_dimension_numbers<[1], [0], [0], [1], [0, 0, 1, 1], [], []>} : vector<16x128xbf16>, vector<128x128xbf16>, vector<16x128xf32> -> vector<16x128xf32>
    %118 = arith.addf %114, %117 : vector<16x128xf32>
    %119 = math.tanh %118 : vector<16x128xf32>
    %c8_i32 = arith.constant 8 : i32
    %120 = arith.truncf %119 : vector<16x128xf32> to vector<16x128xbf16>
    %c0_63 = arith.constant 0 : index
    %c0_64 = arith.constant 0 : index
    %121 = vector.load %arg8[%c0_63, %c0_64] : memref<128x256xbf16, #tpu.memory_space<vmem>>, vector<128x256xbf16>
    %cst_65 = arith.constant dense<0.000000e+00> : vector<16x256xf32>
    %122 = tpu.matmul %120, %121, %cst_65 {dimension_numbers = #tpu.dot_dimension_numbers<[1], [0], [0], [1], [0, 0, 1, 1], [], []>} : vector<16x128xbf16>, vector<128x256xbf16>, vector<16x256xf32> -> vector<16x256xf32>
    %c0_66 = arith.constant 0 : index
    %c0_67 = arith.constant 0 : index
    %123 = vector.load %arg9[%c0_66, %c0_67] : memref<1x256xf32, #tpu.memory_space<vmem>>, vector<1x256xf32>
    %124 = vector.broadcast %123 : vector<1x256xf32> to vector<16x256xf32>
    %125 = arith.addf %122, %124 : vector<16x256xf32>
    %cst_68 = arith.constant 0.000000e+00 : f32
    %126 = vector.broadcast %cst_68 : f32 to vector<16x256xf32>
    %127 = arith.maximumf %125, %126 : vector<16x256xf32>
    %128 = vector.extract_strided_slice %127 {offsets = [0, 0], sizes = [16, 128], strides = [1, 1]} : vector<16x256xf32> to vector<16x128xf32>
    %129 = vector.extract_strided_slice %127 {offsets = [0, 128], sizes = [16, 128], strides = [1, 1]} : vector<16x256xf32> to vector<16x128xf32>
    %c0_69 = arith.constant 0 : index
    %c0_70 = arith.constant 0 : index
    %130 = vector.load %arg2[%c0_69, %c0_70] : memref<128x128xf32, #tpu.memory_space<vmem>>, vector<128x128xf32>
    %131 = arith.truncf %130 : vector<128x128xf32> to vector<128x128xbf16>
    %c0_71 = arith.constant 0 : index
    %c0_72 = arith.constant 0 : index
    %132 = vector.load %arg6[%c0_71, %c0_72] : memref<128x128xbf16, #tpu.memory_space<vmem>>, vector<128x128xbf16>
    %cst_73 = arith.constant dense<0.000000e+00> : vector<128x128xf32>
    %133 = tpu.matmul %131, %132, %cst_73 {dimension_numbers = #tpu.dot_dimension_numbers<[1], [0], [0], [1], [0, 0, 1, 1], [], []>} : vector<128x128xbf16>, vector<128x128xbf16>, vector<128x128xf32> -> vector<128x128xf32>
    %c0_74 = arith.constant 0 : index
    %c0_75 = arith.constant 0 : index
    %134 = vector.load %arg7[%c0_74, %c0_75] : memref<1x128xf32, #tpu.memory_space<vmem>>, vector<1x128xf32>
    %135 = vector.broadcast %134 : vector<1x128xf32> to vector<128x128xf32>
    %136 = arith.addf %133, %135 : vector<128x128xf32>
    %cst_76 = arith.constant 0.000000e+00 : f32
    %137 = vector.broadcast %cst_76 : f32 to vector<128x128xf32>
    %138 = arith.maximumf %136, %137 : vector<128x128xf32>
    %139 = vector.shape_cast %138 : vector<128x128xf32> to vector<16x8x128xf32>
    %c0_77 = arith.constant 0 : index
    %c0_78 = arith.constant 0 : index
    %140 = vector.load %arg10[%c0_77, %c0_78] : memref<1x128xf32, #tpu.memory_space<vmem>>, vector<1x128xf32>
    %141 = vector.broadcast %140 : vector<1x128xf32> to vector<16x128xf32>
    %142 = arith.mulf %128, %141 : vector<16x128xf32>
    %143 = vector.shape_cast %142 : vector<16x128xf32> to vector<16x1x128xf32>
    %144 = vector.broadcast %143 : vector<16x1x128xf32> to vector<16x8x128xf32>
    %145 = arith.mulf %139, %144 : vector<16x8x128xf32>
    %cst_79 = arith.constant dense<0.000000e+00> : vector<16x8xf32>
    %146 = vector.multi_reduction <add>, %145, %cst_79 [2] : vector<16x8x128xf32> to vector<16x8xf32>
    %c0_80 = arith.constant 0 : index
    %c0_81 = arith.constant 0 : index
    %147 = memref.load %arg11[%c0_80, %c0_81] : memref<1x1xf32, #tpu.memory_space<smem>>
    %148 = vector.broadcast %147 : f32 to vector<16x8xf32>
    %149 = arith.addf %146, %148 : vector<16x8xf32>
    %cst_82 = arith.constant dense<0xFF800000> : vector<16xf32>
    %150 = vector.multi_reduction <maximumf>, %149, %cst_82 [1] : vector<16x8xf32> to vector<16xf32>
    %151 = vector.shape_cast %150 : vector<16xf32> to vector<16x1xf32>
    %152 = vector.broadcast %151 : vector<16x1xf32> to vector<16x8xf32>
    %153 = arith.subf %149, %152 : vector<16x8xf32>
    %154 = math.exp %153 : vector<16x8xf32>
    %cst_83 = arith.constant dense<0.000000e+00> : vector<16xf32>
    %155 = vector.multi_reduction <add>, %154, %cst_83 [1] : vector<16x8xf32> to vector<16xf32>
    %156 = vector.shape_cast %155 : vector<16xf32> to vector<16x1xf32>
    %157 = tpu.reciprocal %156 {approx = true} : vector<16x1xf32> -> vector<16x1xf32>
    %158 = vector.broadcast %157 : vector<16x1xf32> to vector<16x8xf32>
    %159 = arith.mulf %154, %158 : vector<16x8xf32>
    %160 = vector.shape_cast %130 : vector<128x128xf32> to vector<16x8x128xf32>
    %161 = vector.shape_cast %159 : vector<16x8xf32> to vector<16x8x1xf32>
    %162 = vector.broadcast %161 : vector<16x8x1xf32> to vector<16x8x128xf32>
    %163 = arith.mulf %162, %160 : vector<16x8x128xf32>
    %cst_84 = arith.constant dense<0.000000e+00> : vector<16x128xf32>
    %164 = vector.multi_reduction <add>, %163, %cst_84 [1] : vector<16x8x128xf32> to vector<16x128xf32>
    %165 = arith.truncf %164 : vector<16x128xf32> to vector<16x128xbf16>
    %c0_85 = arith.constant 0 : index
    %c0_86 = arith.constant 0 : index
    %166 = vector.load %arg12[%c0_85, %c0_86] : memref<128x128xbf16, #tpu.memory_space<vmem>>, vector<128x128xbf16>
    %cst_87 = arith.constant dense<0.000000e+00> : vector<16x128xf32>
    %167 = tpu.matmul %165, %166, %cst_87 {dimension_numbers = #tpu.dot_dimension_numbers<[1], [0], [0], [1], [0, 0, 1, 1], [], []>} : vector<16x128xbf16>, vector<128x128xbf16>, vector<16x128xf32> -> vector<16x128xf32>
    %c0_88 = arith.constant 0 : index
    %c0_89 = arith.constant 0 : index
    %168 = vector.load %arg13[%c0_88, %c0_89] : memref<1x128xf32, #tpu.memory_space<vmem>>, vector<1x128xf32>
    %169 = vector.broadcast %168 : vector<1x128xf32> to vector<16x128xf32>
    %170 = arith.addf %167, %169 : vector<16x128xf32>
    %cst_90 = arith.constant 0.000000e+00 : f32
    %171 = vector.broadcast %cst_90 : f32 to vector<16x128xf32>
    %172 = arith.maximumf %170, %171 : vector<16x128xf32>
    %173 = arith.mulf %129, %172 : vector<16x128xf32>
    %174 = arith.truncf %173 : vector<16x128xf32> to vector<16x128xbf16>
    %c0_91 = arith.constant 0 : index
    %c0_92 = arith.constant 0 : index
    %175 = vector.load %arg14[%c0_91, %c0_92] : memref<128x128xbf16, #tpu.memory_space<vmem>>, vector<128x128xbf16>
    %cst_93 = arith.constant dense<0.000000e+00> : vector<16x128xf32>
    %176 = tpu.matmul %174, %175, %cst_93 {dimension_numbers = #tpu.dot_dimension_numbers<[1], [0], [0], [1], [0, 0, 1, 1], [], []>} : vector<16x128xbf16>, vector<128x128xbf16>, vector<16x128xf32> -> vector<16x128xf32>
    %c0_94 = arith.constant 0 : index
    %c0_95 = arith.constant 0 : index
    %177 = vector.load %arg15[%c0_94, %c0_95] : memref<1x128xf32, #tpu.memory_space<vmem>>, vector<1x128xf32>
    %178 = vector.broadcast %177 : vector<1x128xf32> to vector<16x128xf32>
    %179 = arith.addf %176, %178 : vector<16x128xf32>
    %c0_96 = arith.constant 0 : index
    %c0_97 = arith.constant 0 : index
    %180 = vector.load %arg16[%c0_96, %c0_97] : memref<16x128xf32, #tpu.memory_space<vmem>>, vector<16x128xf32>
    tpu.vector_store %arg16[%c0_96, %c0_97], %179 {strides = array<i32>} : memref<16x128xf32, #tpu.memory_space<vmem>>, vector<16x128xf32>,
    %cst_98 = arith.constant dense<0.000000e+00> : vector<16x128xf32>
    %181 = vector.multi_reduction <add>, %160, %cst_98 [1] : vector<16x8x128xf32> to vector<16x128xf32>
    %c0_99 = arith.constant 0 : index
    %c0_100 = arith.constant 0 : index
    %182 = vector.load %arg17[%c0_99, %c0_100] : memref<16x128xf32, #tpu.memory_space<vmem>>, vector<16x128xf32>
    tpu.vector_store %arg17[%c0_99, %c0_100], %181 {strides = array<i32>} : memref<16x128xf32, #tpu.memory_space<vmem>>, vector<16x128xf32>,
    %c0_101 = arith.constant 0 : index
    %c0_102 = arith.constant 0 : index
    %183 = vector.load %arg18[%c0_101, %c0_102] : memref<16x128xf32, #tpu.memory_space<vmem>>, vector<16x128xf32>
    tpu.vector_store %arg18[%c0_101, %c0_102], %129 {strides = array<i32>} : memref<16x128xf32, #tpu.memory_space<vmem>>, vector<16x128xf32>,
    return
  }
  func.func @transform_0(%arg0: i32) -> (i32, i32) {
    %c0_i32 = arith.constant 0 : i32
    %c0_i32_0 = arith.constant 0 : i32
    return %arg0, %c0_i32 : i32, i32
  }
  func.func @transform_1(%arg0: i32) -> (i32, i32) {
    %c0_i32 = arith.constant 0 : i32
    %c0_i32_0 = arith.constant 0 : i32
    return %arg0, %c0_i32 : i32, i32
  }
  func.func @transform_2(%arg0: i32) -> (i32, i32) {
    %c0_i32 = arith.constant 0 : i32
    %c0_i32_0 = arith.constant 0 : i32
    %c0_i32_1 = arith.constant 0 : i32
    return %c0_i32, %c0_i32_0 : i32, i32
  }
  func.func @transform_3(%arg0: i32) -> (i32, i32) {
    %c0_i32 = arith.constant 0 : i32
    %c0_i32_0 = arith.constant 0 : i32
    %c0_i32_1 = arith.constant 0 : i32
    return %c0_i32, %c0_i32_0 : i32, i32
  }
  func.func @transform_4(%arg0: i32) -> (i32, i32) {
    %c0_i32 = arith.constant 0 : i32
    %c0_i32_0 = arith.constant 0 : i32
    %c0_i32_1 = arith.constant 0 : i32
    return %c0_i32, %c0_i32_0 : i32, i32
  }
  func.func @transform_5(%arg0: i32) -> (i32, i32) {
    %c0_i32 = arith.constant 0 : i32
    %c0_i32_0 = arith.constant 0 : i32
    %c0_i32_1 = arith.constant 0 : i32
    return %c0_i32, %c0_i32_0 : i32, i32
  }
  func.func @transform_6(%arg0: i32) -> (i32, i32) {
    %c0_i32 = arith.constant 0 : i32
    %c0_i32_0 = arith.constant 0 : i32
    %c0_i32_1 = arith.constant 0 : i32
    return %c0_i32, %c0_i32_0 : i32, i32
  }
  func.func @transform_7(%arg0: i32) -> (i32, i32) {
    %c0_i32 = arith.constant 0 : i32
    %c0_i32_0 = arith.constant 0 : i32
    %c0_i32_1 = arith.constant 0 : i32
    return %c0_i32, %c0_i32_0 : i32, i32
  }
  func.func @transform_8(%arg0: i32) -> (i32, i32) {
    %c0_i32 = arith.constant 0 : i32
    %c0_i32_0 = arith.constant 0 : i32
    %c0_i32_1 = arith.constant 0 : i32
    return %c0_i32, %c0_i32_0 : i32, i32
  }
  func.func @transform_9(%arg0: i32) -> (i32, i32) {
    %c0_i32 = arith.constant 0 : i32
    %c0_i32_0 = arith.constant 0 : i32
    %c0_i32_1 = arith.constant 0 : i32
    return %c0_i32, %c0_i32_0 : i32, i32
  }
  func.func @transform_10(%arg0: i32) -> (i32, i32) {
    %c0_i32 = arith.constant 0 : i32
    %c0_i32_0 = arith.constant 0 : i32
    %c0_i32_1 = arith.constant 0 : i32
    return %c0_i32, %c0_i32_0 : i32, i32
  }
  func.func @transform_11(%arg0: i32) -> (i32, i32) {
    %c0_i32 = arith.constant 0 : i32
    %c0_i32_0 = arith.constant 0 : i32
    %c0_i32_1 = arith.constant 0 : i32
    return %c0_i32, %c0_i32_0 : i32, i32
  }
  func.func @transform_12(%arg0: i32) -> (i32, i32) {
    %c0_i32 = arith.constant 0 : i32
    %c0_i32_0 = arith.constant 0 : i32
    %c0_i32_1 = arith.constant 0 : i32
    return %c0_i32, %c0_i32_0 : i32, i32
  }
  func.func @transform_13(%arg0: i32) -> (i32, i32) {
    %c0_i32 = arith.constant 0 : i32
    %c0_i32_0 = arith.constant 0 : i32
    %c0_i32_1 = arith.constant 0 : i32
    return %c0_i32, %c0_i32_0 : i32, i32
  }
  func.func @transform_14(%arg0: i32) -> (i32, i32) {
    %c0_i32 = arith.constant 0 : i32
    %c0_i32_0 = arith.constant 0 : i32
    %c0_i32_1 = arith.constant 0 : i32
    return %c0_i32, %c0_i32_0 : i32, i32
  }
  func.func @transform_15(%arg0: i32) -> (i32, i32) {
    %c0_i32 = arith.constant 0 : i32
    %c0_i32_0 = arith.constant 0 : i32
    return %arg0, %c0_i32 : i32, i32
  }
  func.func @transform_16(%arg0: i32) -> (i32, i32) {
    %c0_i32 = arith.constant 0 : i32
    %c0_i32_0 = arith.constant 0 : i32
    return %arg0, %c0_i32 : i32, i32
  }
  func.func @transform_17(%arg0: i32) -> (i32, i32) {
    %c0_i32 = arith.constant 0 : i32
    %c0_i32_0 = arith.constant 0 : i32
    return %arg0, %c0_i32 : i32, i32
  }
}

</mosaic_0001>

<llo_original>
// kernel: tpu_custom_call.1
$region0: #{tpu_custom_call.1}
  #allocation0 [shape = 'u32[]', space=smem, size = 0x4, offset = 0x4, fixed_abs, tag = 'smem constant byte address 0x4 - core index']
  #allocation1 [shape = 'u32[72,128]{1,0:T(1,128)}', space=vmem, size = 0x9000, scoped, tag = 'internal scratch']
  #allocation2 [shape = 'f32[8,16,128]{2,1,0:T(8,128)}', space=vmem, size = 0x10000, scoped, tag = 'scratch operand']
  #allocation3 [shape = 'f32[1,1]{1,0:T(1,128)S(6)}', space=smem, size = 0x200, scoped, tag = 'scoped memory for tpu_custom_call.1']
  %s0 = inlined_call_operand.vmem [shape: s32[16,8], index: 0, kind: input, shape index: {}]
  %s1 = inlined_call_operand.hbm [shape: f32[128,128], index: 1, kind: input, shape index: {}]
  %s2 = inlined_call_operand.hbm [shape: bf16[128,128], index: 2, kind: input, shape index: {}]
  %s3 = inlined_call_operand.hbm [shape: bf16[128,128], index: 3, kind: input, shape index: {}]
  %s4 = inlined_call_operand.vmem [shape: f32[1,128], index: 4, kind: input, shape index: {}]
  %s5 = inlined_call_operand.hbm [shape: bf16[128,128], index: 5, kind: input, shape index: {}]
  %s6 = inlined_call_operand.vmem [shape: f32[1,128], index: 6, kind: input, shape index: {}]
  %s7 = inlined_call_operand.hbm [shape: bf16[128,256], index: 7, kind: input, shape index: {}]
  %s8 = inlined_call_operand.vmem [shape: f32[1,256], index: 8, kind: input, shape index: {}]
  %s9 = inlined_call_operand.vmem [shape: f32[1,128], index: 9, kind: input, shape index: {}]
  %s10 = inlined_call_operand.<no memory space> [shape: f32[1,1], index: 10, kind: input, shape index: {}]
  %s11 = inlined_call_operand.hbm [shape: bf16[128,128], index: 11, kind: input, shape index: {}]
  %s12 = inlined_call_operand.vmem [shape: f32[1,128], index: 12, kind: input, shape index: {}]
  %s13 = inlined_call_operand.hbm [shape: bf16[128,128], index: 13, kind: input, shape index: {}]
  %s14 = inlined_call_operand.vmem [shape: f32[1,128], index: 14, kind: input, shape index: {}]
  %s15 = inlined_call_operand.hbm [shape: f32[16,128], index: 15, kind: output, shape index: {0}]
  %s16 = inlined_call_operand.hbm [shape: f32[16,128], index: 16, kind: output, shape index: {1}]
  %s17 = inlined_call_operand.hbm [shape: f32[16,128], index: 17, kind: output, shape index: {2}]
  %18 = xla_tuple %s15, %s16, %s17
  %s19 = sld [smem:[#allocation0]]
  $region114: #{tpu_custom_call.1} parent=0
    _
  %s21 = ssub.s32 1, %s19
  %s22 = scalar_select 0, %s21, %s19
  %23 = sst [smem:[#allocation3]] %s10
  $region1: #{tpu_custom_call.1} parent=0
    #allocation4 [shape = 'u8[65536]{0}', space=vmem, size = 0x10000, scoped, tag = 'input window, operand 1, single buffered']
    #allocation5 [shape = 's32[1]{0}', space=sflag, size = 0x4, scoped, tag = 'scoped memory for tpu_custom_call.1']
    #allocation6 [shape = 's32[1]{0}', space=sflag, size = 0x4, scoped, tag = 'scoped memory for tpu_custom_call.1']
    #allocation7 [shape = 'u8[32768]{0}', space=vmem, size = 0x8000, scoped, tag = 'input window, operand 2, single buffered']
    #allocation8 [shape = 's32[1]{0}', space=sflag, size = 0x4, scoped, tag = 'scoped memory for tpu_custom_call.1']
    #allocation9 [shape = 'u8[32768]{0}', space=vmem, size = 0x8000, scoped, tag = 'input window, operand 3, single buffered']
    #allocation10 [shape = 'u8[32768]{0}', space=vmem, size = 0x8000, scoped, tag = 'input window, operand 5, single buffered']
    #allocation11 [shape = 's32[1]{0}', space=sflag, size = 0x4, scoped, tag = 'scoped memory for tpu_custom_call.1']
    #allocation12 [shape = 'u8[65536]{0}', space=vmem, size = 0x10000, scoped, tag = 'input window, operand 7, single buffered']
    #allocation13 [shape = 'u8[32768]{0}', space=vmem, size = 0x8000, scoped, tag = 'input window, operand 11, single buffered']
    #allocation14 [shape = 's32[1]{0}', space=sflag, size = 0x4, scoped, tag = 'scoped memory for tpu_custom_call.1']
    #allocation15 [shape = 'u8[32768]{0}', space=vmem, size = 0x8000, scoped, tag = 'input window, operand 13, single buffered']
    #allocation16 [shape = 'u8[8192]{0}', space=vmem, size = 0x2000, scoped, tag = 'output window, operand 0, single buffered']
    #allocation17 [shape = 'u8[8192]{0}', space=vmem, size = 0x2000, scoped, tag = 'output window, operand 1, single buffered']
    #allocation18 [shape = 's32[1]{0}', space=sflag, size = 0x4, scoped, tag = 'scoped memory for tpu_custom_call.1']
    #allocation19 [shape = 'u8[8192]{0}', space=vmem, size = 0x2000, scoped, tag = 'output window, operand 2, single buffered']
    %24 = vsyncpa [#allocation5], 0
    %25 = vsyncpa [#allocation8], 0
    %26 = vsyncpa [#allocation11], 0
    %27 = vsyncpa [#allocation14], 0
    %28 = vsyncpa [#allocation6], 0
    %29 = vsyncpa [#allocation18], 0
    // Predicated region
    $region2: #{tpu_custom_call.1} parent=1 // pred_check
      _
    $region3: #{tpu_custom_call.1} parent=1 // pred_check_branch
      %31 = sbr.rel (0) target = $region5
    $region4: #{tpu_custom_call.1} parent=1 // pred_region
      _
    $region5: #{tpu_custom_call.1} parent=1 // pred_fallthru
      _
    // Predicated region
    $region6: #{tpu_custom_call.1} parent=1 // pred_check
      _
    $region7: #{tpu_custom_call.1} parent=1 // pred_check_branch
      %33 = sbr.rel (0) target = $region9
    $region8: #{tpu_custom_call.1} parent=1 // pred_region
      %35 = vsyncadd [#allocation5], 0
      %s36 = sshll.u32 %s1, 4
      %s37 = int_to_ptr.hbm [resolvable:$true] %s36
      %s38 = sshll.u32 [#allocation4], 4
      %s39 = int_to_ptr.vmem [resolvable:$true] %s38
      %44 = dma.hbm_to_vmem [thread:$0]  %s37, 2048, %s39, [#allocation5], 128, 128, 8
    $region9: #{tpu_custom_call.1} parent=1 // pred_fallthru
      _
    // Predicated region
    $region10: #{tpu_custom_call.1} parent=1 // pred_check
      _
    $region11: #{tpu_custom_call.1} parent=1 // pred_check_branch
      %46 = sbr.rel (0) target = $region13
    $region12: #{tpu_custom_call.1} parent=1 // pred_region
      %48 = vsyncadd [#allocation8], 0
      %s49 = sshll.u32 %s2, 4
      %s50 = int_to_ptr.hbm [resolvable:$true] %s49
      %s51 = sshll.u32 [#allocation7], 4
      %s52 = int_to_ptr.vmem [resolvable:$true] %s51
      %57 = dma.hbm_to_vmem [thread:$0]  %s50, 1024, %s52, [#allocation8], 64, 64, 4
    $region13: #{tpu_custom_call.1} parent=1 // pred_fallthru
      _
    // Predicated region
    $region14: #{tpu_custom_call.1} parent=1 // pred_check
      _
    $region15: #{tpu_custom_call.1} parent=1 // pred_check_branch
      %59 = sbr.rel (0) target = $region17
    $region16: #{tpu_custom_call.1} parent=1 // pred_region
      %61 = vsyncadd [#allocation8], 0
      %s62 = sshll.u32 %s3, 4
      %s63 = int_to_ptr.hbm [resolvable:$true] %s62
      %s64 = sshll.u32 [#allocation9], 4
      %s65 = int_to_ptr.vmem [resolvable:$true] %s64
      %70 = dma.hbm_to_vmem [thread:$0]  %s63, 1024, %s65, [#allocation8], 64, 64, 4
    $region17: #{tpu_custom_call.1} parent=1 // pred_fallthru
      _
    // Predicated region
    $region18: #{tpu_custom_call.1} parent=1 // pred_check
      _
    $region19: #{tpu_custom_call.1} parent=1 // pred_check_branch
      %72 = sbr.rel (0) target = $region21
    $region20: #{tpu_custom_call.1} parent=1 // pred_region
      _
    $region21: #{tpu_custom_call.1} parent=1 // pred_fallthru
      _
    // Predicated region
    $region22: #{tpu_custom_call.1} parent=1 // pred_check
      _
    $region23: #{tpu_custom_call.1} parent=1 // pred_check_branch
      %74 = sbr.rel (0) target = $region25
    $region24: #{tpu_custom_call.1} parent=1 // pred_region
      %76 = vsyncadd [#allocation11], 0
      %s77 = sshll.u32 %s5, 4
      %s78 = int_to_ptr.hbm [resolvable:$true] %s77
      %s79 = sshll.u32 [#allocation10], 4
      %s80 = int_to_ptr.vmem [resolvable:$true] %s79
      %85 = dma.hbm_to_vmem [thread:$0]  %s78, 1024, %s80, [#allocation11], 64, 64, 4
    $region25: #{tpu_custom_call.1} parent=1 // pred_fallthru
      _
    // Predicated region
    $region26: #{tpu_custom_call.1} parent=1 // pred_check
      _
    $region27: #{tpu_custom_call.1} parent=1 // pred_check_branch
      %87 = sbr.rel (0) target = $region29
    $region28: #{tpu_custom_call.1} parent=1 // pred_region
      _
    $region29: #{tpu_custom_call.1} parent=1 // pred_fallthru
      _
    // Predicated region
    $region30: #{tpu_custom_call.1} parent=1 // pred_check
      _
    $region31: #{tpu_custom_call.1} parent=1 // pred_check_branch
      %89 = sbr.rel (0) target = $region33
    $region32: #{tpu_custom_call.1} parent=1 // pred_region
      %91 = vsyncadd [#allocation11], 0
      %s92 = sshll.u32 %s7, 4
      %s93 = int_to_ptr.hbm [resolvable:$true] %s92
      %s94 = sshll.u32 [#allocation12], 4
      %s95 = int_to_ptr.vmem [resolvable:$true] %s94
      %100 = dma.hbm_to_vmem [thread:$0]  %s93, 2048, %s95, [#allocation11], 128, 128, 8
    $region33: #{tpu_custom_call.1} parent=1 // pred_fallthru
      _
    // Predicated region
    $region34: #{tpu_custom_call.1} parent=1 // pred_check
      _
    $region35: #{tpu_custom_call.1} parent=1 // pred_check_branch
      %102 = sbr.rel (0) target = $region37
    $region36: #{tpu_custom_call.1} parent=1 // pred_region
      _
    $region37: #{tpu_custom_call.1} parent=1 // pred_fallthru
      _
    // Predicated region
    $region38: #{tpu_custom_call.1} parent=1 // pred_check
      _
    $region39: #{tpu_custom_call.1} parent=1 // pred_check_branch
      %104 = sbr.rel (0) target = $region41
    $region40: #{tpu_custom_call.1} parent=1 // pred_region
      _
    $region41: #{tpu_custom_call.1} parent=1 // pred_fallthru
      _
    // Predicated region
    $region42: #{tpu_custom_call.1} parent=1 // pred_check
      _
    $region43: #{tpu_custom_call.1} parent=1 // pred_check_branch
      %106 = sbr.rel (0) target = $region45
    $region44: #{tpu_custom_call.1} parent=1 // pred_region
      _
    $region45: #{tpu_custom_call.1} parent=1 // pred_fallthru
      _
    // Predicated region
    $region46: #{tpu_custom_call.1} parent=1 // pred_check
      _
    $region47: #{tpu_custom_call.1} parent=1 // pred_check_branch
      %108 = sbr.rel (0) target = $region49
    $region48: #{tpu_custom_call.1} parent=1 // pred_region
      %110 = vsyncadd [#allocation14], 0
      %s111 = sshll.u32 %s11, 4
      %s112 = int_to_ptr.hbm [resolvable:$true] %s111
      %s113 = sshll.u32 [#allocation13], 4
      %s114 = int_to_ptr.vmem [resolvable:$true] %s113
      %119 = dma.hbm_to_vmem [thread:$0]  %s112, 1024, %s114, [#allocation14], 64, 64, 4
    $region49: #{tpu_custom_call.1} parent=1 // pred_fallthru
      _
    // Predicated region
    $region50: #{tpu_custom_call.1} parent=1 // pred_check
      _
    $region51: #{tpu_custom_call.1} parent=1 // pred_check_branch
      %121 = sbr.rel (0) target = $region53
    $region52: #{tpu_custom_call.1} parent=1 // pred_region
      _
    $region53: #{tpu_custom_call.1} parent=1 // pred_fallthru
      _
    // Predicated region
    $region54: #{tpu_custom_call.1} parent=1 // pred_check
      _
    $region55: #{tpu_custom_call.1} parent=1 // pred_check_branch
      %123 = sbr.rel (0) target = $region57
    $region56: #{tpu_custom_call.1} parent=1 // pred_region
      %125 = vsyncadd [#allocation14], 0
      %s126 = sshll.u32 %s13, 4
      %s127 = int_to_ptr.hbm [resolvable:$true] %s126
      %s128 = sshll.u32 [#allocation15], 4
      %s129 = int_to_ptr.vmem [resolvable:$true] %s128
      %134 = dma.hbm_to_vmem [thread:$0]  %s127, 1024, %s129, [#allocation14], 64, 64, 4
    $region57: #{tpu_custom_call.1} parent=1 // pred_fallthru
      _
    // Predicated region
    $region58: #{tpu_custom_call.1} parent=1 // pred_check
      _
    $region59: #{tpu_custom_call.1} parent=1 // pred_check_branch
      %136 = sbr.rel (0) target = $region61
    $region60: #{tpu_custom_call.1} parent=1 // pred_region
      _
    $region61: #{tpu_custom_call.1} parent=1 // pred_fallthru
      _
    // Predicated region
    $region62: #{tpu_custom_call.1} parent=1 // pred_check
      _
    $region63: #{tpu_custom_call.1} parent=1 // pred_check_branch
      %138 = sbr.rel (0) target = $region65
    $region64: #{tpu_custom_call.1} parent=1 // pred_region
      %140 = dma.done [#allocation5], 2048
    $region65: #{tpu_custom_call.1} parent=1 // pred_fallthru
      _
    // Predicated region
    $region66: #{tpu_custom_call.1} parent=1 // pred_check
      _
    $region67: #{tpu_custom_call.1} parent=1 // pred_check_branch
      %142 = sbr.rel (0) target = $region69
    $region68: #{tpu_custom_call.1} parent=1 // pred_region
      %144 = dma.done [#allocation8], 1024
    $region69: #{tpu_custom_call.1} parent=1 // pred_fallthru
      _
    // Predicated region
    $region70: #{tpu_custom_call.1} parent=1 // pred_check
      _
    $region71: #{tpu_custom_call.1} parent=1 // pred_check_branch
      %146 = sbr.rel (0) target = $region73
    $region72: #{tpu_custom_call.1} parent=1 // pred_region
      %148 = dma.done [#allocation8], 1024
    $region73: #{tpu_custom_call.1} parent=1 // pred_fallthru
      _
    // Predicated region
    $region74: #{tpu_custom_call.1} parent=1 // pred_check
      _
    $region75: #{tpu_custom_call.1} parent=1 // pred_check_branch
      %150 = sbr.rel (0) target = $region77
    $region76: #{tpu_custom_call.1} parent=1 // pred_region
      %152 = dma.done [#allocation11], 1024
    $region77: #{tpu_custom_call.1} parent=1 // pred_fallthru
      _
    // Predicated region
    $region78: #{tpu_custom_call.1} parent=1 // pred_check
      _
    $region79: #{tpu_custom_call.1} parent=1 // pred_check_branch
      %154 = sbr.rel (0) target = $region81
    $region80: #{tpu_custom_call.1} parent=1 // pred_region
      %156 = dma.done [#allocation11], 2048
    $region81: #{tpu_custom_call.1} parent=1 // pred_fallthru
      _
    // Predicated region
    $region82: #{tpu_custom_call.1} parent=1 // pred_check
      _
    $region83: #{tpu_custom_call.1} parent=1 // pred_check_branch
      %158 = sbr.rel (0) target = $region85
    $region84: #{tpu_custom_call.1} parent=1 // pred_region
      %160 = dma.done [#allocation14], 1024
    $region85: #{tpu_custom_call.1} parent=1 // pred_fallthru
      _
    // Predicated region
    $region86: #{tpu_custom_call.1} parent=1 // pred_check
      _
    $region87: #{tpu_custom_call.1} parent=1 // pred_check_branch
      %162 = sbr.rel (0) target = $region89
    $region88: #{tpu_custom_call.1} parent=1 // pred_region
      %164 = dma.done [#allocation14], 1024
    $region89: #{tpu_custom_call.1} parent=1 // pred_fallthru
      _
    %v166 = vld [vmem:[%s0] sm:$0xff]
    %v167 = vld [vmem:[%s0 + $0x8] sm:$0xff]
    %v168 = vlaneseq
    %v169 = vand.u32 %v168, 127
    %v170 = vperm.slane %v166, 0
    %v171 = vlaneseq
    %v172 = vshrl.u32 %v171, 7
    %174 = vset.pattern.permute.xlu0 %v172
    %175 = vperm.xlu0 %174, %v170
    %v176 = vpop.permute.xlu0 %175
    %v177 = vperm.slane %v166, 1
    %v178 = vlaneseq
    %v179 = vshrl.u32 %v178, 7
    %181 = vset.pattern.permute.xlu0 %v179
    %182 = vperm.xlu0 %181, %v177
    %v183 = vpop.permute.xlu0 %182
    %v184 = vperm.slane %v166, 2
    %v185 = vlaneseq
    %v186 = vshrl.u32 %v185, 7
    %188 = vset.pattern.permute.xlu0 %v186
    %189 = vperm.xlu0 %188, %v184
    %v190 = vpop.permute.xlu0 %189
    %v191 = vperm.slane %v166, 3
    %v192 = vlaneseq
    %v193 = vshrl.u32 %v192, 7
    %195 = vset.pattern.permute.xlu0 %v193
    %196 = vperm.xlu0 %195, %v191
    %v197 = vpop.permute.xlu0 %196
    %v198 = vperm.slane %v166, 4
    %v199 = vlaneseq
    %v200 = vshrl.u32 %v199, 7
    %202 = vset.pattern.permute.xlu0 %v200
    %203 = vperm.xlu0 %202, %v198
    %v204 = vpop.permute.xlu0 %203
    %v205 = vperm.slane %v166, 5
    %v206 = vlaneseq
    %v207 = vshrl.u32 %v206, 7
    %209 = vset.pattern.permute.xlu0 %v207
    %210 = vperm.xlu0 %209, %v205
    %v211 = vpop.permute.xlu0 %210
    %v212 = vperm.slane %v166, 6
    %v213 = vlaneseq
    %v214 = vshrl.u32 %v213, 7
    %216 = vset.pattern.permute.xlu0 %v214
    %217 = vperm.xlu0 %216, %v212
    %v218 = vpop.permute.xlu0 %217
    %v219 = vperm.slane %v166, 7
    %v220 = vlaneseq
    %v221 = vshrl.u32 %v220, 7
    %223 = vset.pattern.permute.xlu0 %v221
    %224 = vperm.xlu0 %223, %v219
    %v225 = vpop.permute.xlu0 %224
    %v226 = vperm.slane %v167, 0
    %v227 = vlaneseq
    %v228 = vshrl.u32 %v227, 7
    %230 = vset.pattern.permute.xlu0 %v228
    %231 = vperm.xlu0 %230, %v226
    %v232 = vpop.permute.xlu0 %231
    %v233 = vperm.slane %v167, 1
    %v234 = vlaneseq
    %v235 = vshrl.u32 %v234, 7
    %237 = vset.pattern.permute.xlu0 %v235
    %238 = vperm.xlu0 %237, %v233
    %v239 = vpop.permute.xlu0 %238
    %v240 = vperm.slane %v167, 2
    %v241 = vlaneseq
    %v242 = vshrl.u32 %v241, 7
    %244 = vset.pattern.permute.xlu0 %v242
    %245 = vperm.xlu0 %244, %v240
    %v246 = vpop.permute.xlu0 %245
    %v247 = vperm.slane %v167, 3
    %v248 = vlaneseq
    %v249 = vshrl.u32 %v248, 7
    %251 = vset.pattern.permute.xlu0 %v249
    %252 = vperm.xlu0 %251, %v247
    %v253 = vpop.permute.xlu0 %252
    %v254 = vperm.slane %v167, 4
    %v255 = vlaneseq
    %v256 = vshrl.u32 %v255, 7
    %258 = vset.pattern.permute.xlu0 %v256
    %259 = vperm.xlu0 %258, %v254
    %v260 = vpop.permute.xlu0 %259
    %v261 = vperm.slane %v167, 5
    %v262 = vlaneseq
    %v263 = vshrl.u32 %v262, 7
    %265 = vset.pattern.permute.xlu0 %v263
    %266 = vperm.xlu0 %265, %v261
    %v267 = vpop.permute.xlu0 %266
    %v268 = vperm.slane %v167, 6
    %v269 = vlaneseq
    %v270 = vshrl.u32 %v269, 7
    %272 = vset.pattern.permute.xlu0 %v270
    %273 = vperm.xlu0 %272, %v268
    %v274 = vpop.permute.xlu0 %273
    %v275 = vperm.slane %v167, 7
    %v276 = vlaneseq
    %v277 = vshrl.u32 %v276, 7
    %279 = vset.pattern.permute.xlu0 %v277
    %280 = vperm.xlu0 %279, %v275
    %v281 = vpop.permute.xlu0 %280
    %vm282 = vcmp.eq.s32.totalorder %v176, %v169
    %vm283 = vcmp.eq.s32.totalorder %v183, %v169
    %vm284 = vcmp.eq.s32.totalorder %v190, %v169
    %vm285 = vcmp.eq.s32.totalorder %v197, %v169
    %vm286 = vcmp.eq.s32.totalorder %v204, %v169
    %vm287 = vcmp.eq.s32.totalorder %v211, %v169
    %vm288 = vcmp.eq.s32.totalorder %v218, %v169
    %vm289 = vcmp.eq.s32.totalorder %v225, %v169
    %vm290 = vcmp.eq.s32.totalorder %v232, %v169
    %vm291 = vcmp.eq.s32.totalorder %v239, %v169
    %vm292 = vcmp.eq.s32.totalorder %v246, %v169
    %vm293 = vcmp.eq.s32.totalorder %v253, %v169
    %vm294 = vcmp.eq.s32.totalorder %v260, %v169
    %vm295 = vcmp.eq.s32.totalorder %v267, %v169
    %vm296 = vcmp.eq.s32.totalorder %v274, %v169
    %vm297 = vcmp.eq.s32.totalorder %v281, %v169
    %v298 = vsel %vm282, 1, 0
    %v299 = vsel %vm283, 1, 0
    %v300 = vsel %vm284, 1, 0
    %v301 = vsel %vm285, 1, 0
    %v302 = vsel %vm286, 1, 0
    %v303 = vsel %vm287, 1, 0
    %v304 = vsel %vm288, 1, 0
    %v305 = vsel %vm289, 1, 0
    %v306 = vsel %vm290, 1, 0
    %v307 = vsel %vm291, 1, 0
    %v308 = vsel %vm292, 1, 0
    %v309 = vsel %vm293, 1, 0
    %v310 = vsel %vm294, 1, 0
    %v311 = vsel %vm295, 1, 0
    %v312 = vsel %vm296, 1, 0
    %v313 = vsel %vm297, 1, 0
    %v314 = vcvt.s32.f32 %v298
    %v315 = vcvt.s32.f32 %v299
    %v316 = vcvt.s32.f32 %v300
    %v317 = vcvt.s32.f32 %v301
    %v318 = vcvt.s32.f32 %v302
    %v319 = vcvt.s32.f32 %v303
    %v320 = vcvt.s32.f32 %v304
    %v321 = vcvt.s32.f32 %v305
    %v322 = vcvt.s32.f32 %v306
    %v323 = vcvt.s32.f32 %v307
    %v324 = vcvt.s32.f32 %v308
    %v325 = vcvt.s32.f32 %v309
    %v326 = vcvt.s32.f32 %v310
    %v327 = vcvt.s32.f32 %v311
    %v328 = vcvt.s32.f32 %v312
    %v329 = vcvt.s32.f32 %v313
    %v330 = vpack.c.bf16 %v314, %v314
    %v331 = vpack.c.bf16 %v315, %v315
    %v332 = vpack.c.bf16 %v316, %v316
    %v333 = vpack.c.bf16 %v317, %v317
    %v334 = vpack.c.bf16 %v318, %v318
    %v335 = vpack.c.bf16 %v319, %v319
    %v336 = vpack.c.bf16 %v320, %v320
    %v337 = vpack.c.bf16 %v321, %v321
    %v338 = vpack.c.bf16 %v322, %v322
    %v339 = vpack.c.bf16 %v323, %v323
    %v340 = vpack.c.bf16 %v324, %v324
    %v341 = vpack.c.bf16 %v325, %v325
    %v342 = vpack.c.bf16 %v326, %v326
    %v343 = vpack.c.bf16 %v327, %v327
    %v344 = vpack.c.bf16 %v328, %v328
    %v345 = vpack.c.bf16 %v329, %v329
    %v346 = vld [vmem:[#allocation7] sm:$0xf]
    %v347 = vld [vmem:[#allocation7 + $0x4] sm:$0xf]
    %v348 = vld [vmem:[#allocation7 + $0x8] sm:$0xf]
    %v349 = vld [vmem:[#allocation7 + $0xc] sm:$0xf]
    %v350 = vld [vmem:[#allocation7 + $0x10] sm:$0xf]
    %v351 = vld [vmem:[#allocation7 + $0x14] sm:$0xf]
    %v352 = vld [vmem:[#allocation7 + $0x18] sm:$0xf]
    %v353 = vld [vmem:[#allocation7 + $0x1c] sm:$0xf]
    %v354 = vld [vmem:[#allocation7 + $0x20] sm:$0xf]
    %v355 = vld [vmem:[#allocation7 + $0x24] sm:$0xf]
    %v356 = vld [vmem:[#allocation7 + $0x28] sm:$0xf]
    %v357 = vld [vmem:[#allocation7 + $0x2c] sm:$0xf]
    %v358 = vld [vmem:[#allocation7 + $0x30] sm:$0xf]
    %v359 = vld [vmem:[#allocation7 + $0x34] sm:$0xf]
    %v360 = vld [vmem:[#allocation7 + $0x38] sm:$0xf]
    %v361 = vld [vmem:[#allocation7 + $0x3c] sm:$0xf]
    %v362 = vld [vmem:[%s4] sm:$0x1]
    %v364 = vperm.slane %v362, 0
    %v382 = vunpack.c.l.b16 %v330
    %v383 = vunpack.c.l.b16 %v331
    %v384 = vunpack.c.l.b16 %v332
    %v385 = vunpack.c.l.b16 %v333
    %v386 = vunpack.c.l.b16 %v334
    %v387 = vunpack.c.l.b16 %v335
    %v388 = vunpack.c.l.b16 %v336
    %v389 = vunpack.c.l.b16 %v337
    %v390 = vunpack.c.l.b16 %v338
    %v391 = vunpack.c.l.b16 %v339
    %v392 = vunpack.c.l.b16 %v340
    %v393 = vunpack.c.l.b16 %v341
    %v394 = vunpack.c.l.b16 %v342
    %v395 = vunpack.c.l.b16 %v343
    %v396 = vunpack.c.l.b16 %v344
    %v397 = vunpack.c.l.b16 %v345
    %v398 = vpack.c.b16 %v383, %v382
    %v399 = vpack.c.b16 %v385, %v384
    %v400 = vpack.c.b16 %v387, %v386
    %v401 = vpack.c.b16 %v389, %v388
    %v402 = vpack.c.b16 %v391, %v390
    %v403 = vpack.c.b16 %v393, %v392
    %v404 = vpack.c.b16 %v395, %v394
    %v405 = vpack.c.b16 %v397, %v396
    %v430 = vunpack.c.l.b16 %v346
    %v431 = vunpack.c.l.b16 %v347
    %v432 = vunpack.c.l.b16 %v348
    %v433 = vunpack.c.l.b16 %v349
    %v434 = vunpack.c.l.b16 %v350
    %v435 = vunpack.c.l.b16 %v351
    %v436 = vunpack.c.l.b16 %v352
    %v437 = vunpack.c.l.b16 %v353
    %v438 = vunpack.c.l.b16 %v354
    %v439 = vunpack.c.l.b16 %v355
    %v440 = vunpack.c.l.b16 %v356
    %v441 = vunpack.c.l.b16 %v357
    %v442 = vunpack.c.l.b16 %v358
    %v443 = vunpack.c.l.b16 %v359
    %v444 = vunpack.c.l.b16 %v360
    %v445 = vunpack.c.l.b16 %v361
    %v446 = vpack.c.b16 %v431, %v430
    %v447 = vpack.c.b16 %v433, %v432
    %v448 = vpack.c.b16 %v435, %v434
    %v449 = vpack.c.b16 %v437, %v436
    %v450 = vpack.c.b16 %v439, %v438
    %v451 = vpack.c.b16 %v441, %v440
    %v452 = vpack.c.b16 %v443, %v442
    %v453 = vpack.c.b16 %v445, %v444
    %462 = vmatpush.bf16.msra.mxu0 %v453
    %463 = vmatpush.bf16.msra.mxu0 %v452
    %464 = vmatpush.bf16.msra.mxu0 %v451
    %465 = vmatpush.bf16.msra.mxu0 %v450
    %466 = vmatpush.bf16.msra.mxu0 %v449
    %467 = vmatpush.bf16.msra.mxu0 %v448
    %468 = vmatpush.bf16.msra.mxu0 %v447
    %469 = vmatpush.bf16.msra.mxu0 %v446
    %470 = vmatmul.bf16.gmra.mxu0 %v398
    %v471 = vpop.f32.mrf.mxu0
    %v472 = vadd.f32 %v364, %v471
    %v473 = vpop.f32.mrf.mxu0
    %v474 = vadd.f32 %v364, %v473
    %475 = vmatmul.bf16.gmra.mxu0 %v399
    %v476 = vpop.f32.mrf.mxu0
    %v477 = vadd.f32 %v364, %v476
    %v478 = vpop.f32.mrf.mxu0
    %v479 = vadd.f32 %v364, %v478
    %480 = vmatmul.bf16.gmra.mxu0 %v400
    %v481 = vpop.f32.mrf.mxu0
    %v482 = vadd.f32 %v364, %v481
    %v483 = vpop.f32.mrf.mxu0
    %v484 = vadd.f32 %v364, %v483
    %485 = vmatmul.bf16.gmra.mxu0 %v401
    %v486 = vpop.f32.mrf.mxu0
    %v487 = vadd.f32 %v364, %v486
    %v488 = vpop.f32.mrf.mxu0
    %v489 = vadd.f32 %v364, %v488
    %490 = vmatmul.bf16.gmra.mxu0 %v402
    %v491 = vpop.f32.mrf.mxu0
    %v492 = vadd.f32 %v364, %v491
    %v493 = vpop.f32.mrf.mxu0
    %v494 = vadd.f32 %v364, %v493
    %495 = vmatmul.bf16.gmra.mxu0 %v403
    %v496 = vpop.f32.mrf.mxu0
    %v497 = vadd.f32 %v364, %v496
    %v498 = vpop.f32.mrf.mxu0
    %v499 = vadd.f32 %v364, %v498
    %500 = vmatmul.bf16.gmra.mxu0 %v404
    %v501 = vpop.f32.mrf.mxu0
    %v502 = vadd.f32 %v364, %v501
    %v503 = vpop.f32.mrf.mxu0
    %v504 = vadd.f32 %v364, %v503
    %505 = vmatmul.bf16.gmra.mxu0 %v405
    %v506 = vpop.f32.mrf.mxu0
    %v507 = vadd.f32 %v364, %v506
    %v508 = vpop.f32.mrf.mxu0
    %v509 = vadd.f32 %v364, %v508
    %510 = vdwg.mxu0
    %v527 = vrot.slane %v474, 7
    %vm528 = vcmask 1041409
    %v529 = vsel %vm528, %v527, %v472
    %v530 = vrot.slane %v477, 6
    %vm531 = vcmask 1042434
    %v532 = vsel %vm531, %v530, %v529
    %v533 = vrot.slane %v479, 5
    %vm534 = vcmask 1043459
    %v535 = vsel %vm534, %v533, %v532
    %v536 = vrot.slane %v482, 4
    %vm537 = vcmask 1044484
    %v538 = vsel %vm537, %v536, %v535
    %v539 = vrot.slane %v484, 3
    %vm540 = vcmask 1045509
    %v541 = vsel %vm540, %v539, %v538
    %v542 = vrot.slane %v487, 2
    %vm543 = vcmask 1046534
    %v544 = vsel %vm543, %v542, %v541
    %v545 = vrot.slane %v489, 1
    %vm546 = vcmask 1047559
    %v547 = vsel %vm546, %v545, %v544
    %v548 = vrot.slane %v494, 7
    %v549 = vsel %vm528, %v548, %v492
    %v550 = vrot.slane %v497, 6
    %v551 = vsel %vm531, %v550, %v549
    %v552 = vrot.slane %v499, 5
    %v553 = vsel %vm534, %v552, %v551
    %v554 = vrot.slane %v502, 4
    %v555 = vsel %vm537, %v554, %v553
    %v556 = vrot.slane %v504, 3
    %v557 = vsel %vm540, %v556, %v555
    %v558 = vrot.slane %v507, 2
    %v559 = vsel %vm543, %v558, %v557
    %v560 = vrot.slane %v509, 1
    %v561 = vsel %vm546, %v560, %v559
    %564 = vst [vmem:[#allocation2] sm:$0xff] %v547
    %565 = vst [vmem:[#allocation2 + $0x8] sm:$0xff] %v561
    %v566 = vsel %vm531, %v527, %v472
    %v567 = vsel %vm534, %v530, %v566
    %v568 = vsel %vm537, %v533, %v567
    %v569 = vsel %vm540, %v536, %v568
    %v570 = vsel %vm543, %v539, %v569
    %v571 = vsel %vm546, %v542, %v570
    %v572 = vsel %vm528, %v492, %v545
    %v573 = vsel %vm531, %v548, %v572
    %v574 = vsel %vm534, %v550, %v573
    %v575 = vsel %vm537, %v552, %v574
    %v576 = vsel %vm540, %v554, %v575
    %v577 = vsel %vm543, %v556, %v576
    %v578 = vsel %vm546, %v558, %v577
    %s582 = scalar_lea.vmem [#allocation2], 16
    %583 = vst [vmem:[%s582 - $0x1] sm:$0xfe] %v571
    %584 = vst [vmem:[%s582 + $0x7] sm:$0xff] %v578
    %585 = vst [vmem:[%s582 + $0xf] sm:$0x1] %v560
    %v586 = vsel %vm534, %v527, %v472
    %v587 = vsel %vm537, %v530, %v586
    %v588 = vsel %vm540, %v533, %v587
    %v589 = vsel %vm543, %v536, %v588
    %v590 = vsel %vm546, %v539, %v589
    %v591 = vsel %vm528, %v545, %v542
    %v592 = vsel %vm531, %v492, %v591
    %v593 = vsel %vm534, %v548, %v592
    %v594 = vsel %vm537, %v550, %v593
    %v595 = vsel %vm540, %v552, %v594
    %v596 = vsel %vm543, %v554, %v595
    %v597 = vsel %vm546, %v556, %v596
    %v598 = vsel %vm528, %v560, %v558
    %s602 = scalar_lea.vmem [#allocation2], 32
    %603 = vst [vmem:[%s602 - $0x2] sm:$0xfc] %v590
    %604 = vst [vmem:[%s602 + $0x6] sm:$0xff] %v597
    %605 = vst [vmem:[%s602 + $0xe] sm:$0x3] %v598
    %v606 = vsel %vm537, %v527, %v472
    %v607 = vsel %vm540, %v530, %v606
    %v608 = vsel %vm543, %v533, %v607
    %v609 = vsel %vm546, %v536, %v608
    %v610 = vsel %vm528, %v542, %v539
    %v611 = vsel %vm531, %v545, %v610
    %v612 = vsel %vm534, %v492, %v611
    %v613 = vsel %vm537, %v548, %v612
    %v614 = vsel %vm540, %v550, %v613
    %v615 = vsel %vm543, %v552, %v614
    %v616 = vsel %vm546, %v554, %v615
    %v617 = vsel %vm528, %v558, %v556
    %v618 = vsel %vm531, %v560, %v617
    %s622 = scalar_lea.vmem [#allocation2], 48
    %623 = vst [vmem:[%s622 - $0x3] sm:$0xf8] %v609
    %624 = vst [vmem:[%s622 + $0x5] sm:$0xff] %v616
    %625 = vst [vmem:[%s622 + $0xd] sm:$0x7] %v618
    %v626 = vsel %vm540, %v527, %v472
    %v627 = vsel %vm543, %v530, %v626
    %v628 = vsel %vm546, %v533, %v627
    %v629 = vsel %vm528, %v539, %v536
    %v630 = vsel %vm531, %v542, %v629
    %v631 = vsel %vm534, %v545, %v630
    %v632 = vsel %vm537, %v492, %v631
    %v633 = vsel %vm540, %v548, %v632
    %v634 = vsel %vm543, %v550, %v633
    %v635 = vsel %vm546, %v552, %v634
    %v636 = vsel %vm528, %v556, %v554
    %v637 = vsel %vm531, %v558, %v636
    %v638 = vsel %vm534, %v560, %v637
    %s642 = scalar_lea.vmem [#allocation2], 64
    %643 = vst [vmem:[%s642 - $0x4] sm:$0xf0] %v628
    %644 = vst [vmem:[%s642 + $0x4] sm:$0xff] %v635
    %645 = vst [vmem:[%s642 + $0xc] sm:$0xf] %v638
    %v646 = vsel %vm543, %v527, %v472
    %v647 = vsel %vm546, %v530, %v646
    %v648 = vsel %vm528, %v536, %v533
    %v649 = vsel %vm531, %v539, %v648
    %v650 = vsel %vm534, %v542, %v649
    %v651 = vsel %vm537, %v545, %v650
    %v652 = vsel %vm540, %v492, %v651
    %v653 = vsel %vm543, %v548, %v652
    %v654 = vsel %vm546, %v550, %v653
    %v655 = vsel %vm528, %v554, %v552
    %v656 = vsel %vm531, %v556, %v655
    %v657 = vsel %vm534, %v558, %v656
    %v658 = vsel %vm537, %v560, %v657
    %s662 = scalar_lea.vmem [#allocation2], 80
    %663 = vst [vmem:[%s662 - $0x5] sm:$0xe0] %v647
    %664 = vst [vmem:[%s662 + $0x3] sm:$0xff] %v654
    %665 = vst [vmem:[%s662 + $0xb] sm:$0x1f] %v658
    %v666 = vsel %vm546, %v527, %v472
    %v667 = vsel %vm528, %v533, %v530
    %v668 = vsel %vm531, %v536, %v667
    %v669 = vsel %vm534, %v539, %v668
    %v670 = vsel %vm537, %v542, %v669
    %v671 = vsel %vm540, %v545, %v670
    %v672 = vsel %vm543, %v492, %v671
    %v673 = vsel %vm546, %v548, %v672
    %v674 = vsel %vm528, %v552, %v550
    %v675 = vsel %vm531, %v554, %v674
    %v676 = vsel %vm534, %v556, %v675
    %v677 = vsel %vm537, %v558, %v676
    %v678 = vsel %vm540, %v560, %v677
    %s682 = scalar_lea.vmem [#allocation2], 96
    %683 = vst [vmem:[%s682 - $0x6] sm:$0xc0] %v666
    %684 = vst [vmem:[%s682 + $0x2] sm:$0xff] %v673
    %685 = vst [vmem:[%s682 + $0xa] sm:$0x3f] %v678
    %v686 = vsel %vm528, %v530, %v527
    %v687 = vsel %vm531, %v533, %v686
    %v688 = vsel %vm534, %v536, %v687
    %v689 = vsel %vm537, %v539, %v688
    %v690 = vsel %vm540, %v542, %v689
    %v691 = vsel %vm543, %v545, %v690
    %v692 = vsel %vm546, %v492, %v691
    %v693 = vsel %vm528, %v550, %v548
    %v694 = vsel %vm531, %v552, %v693
    %v695 = vsel %vm534, %v554, %v694
    %v696 = vsel %vm537, %v556, %v695
    %v697 = vsel %vm540, %v558, %v696
    %v698 = vsel %vm543, %v560, %v697
    %s702 = scalar_lea.vmem [#allocation2], 112
    %703 = vst [vmem:[%s702 - $0x7] sm:$0x80] %v472
    %704 = vst [vmem:[%s702 + $0x1] sm:$0xff] %v692
    %705 = vst [vmem:[%s702 + $0x9] sm:$0x7f] %v698
    %v706 = vld [vmem:[#allocation2] sm:$0xff]
    %v707 = vld [vmem:[#allocation2 + $0x8] sm:$0xff]
    %v708 = vld [vmem:[#allocation9] sm:$0xf]
    %v709 = vld [vmem:[#allocation9 + $0x4] sm:$0xf]
    %v710 = vld [vmem:[#allocation9 + $0x8] sm:$0xf]
    %v711 = vld [vmem:[#allocation9 + $0xc] sm:$0xf]
    %v712 = vld [vmem:[#allocation9 + $0x10] sm:$0xf]
    %v713 = vld [vmem:[#allocation9 + $0x14] sm:$0xf]
    %v714 = vld [vmem:[#allocation9 + $0x18] sm:$0xf]
    %v715 = vld [vmem:[#allocation9 + $0x1c] sm:$0xf]
    %v716 = vld [vmem:[#allocation9 + $0x20] sm:$0xf]
    %v717 = vld [vmem:[#allocation9 + $0x24] sm:$0xf]
    %v718 = vld [vmem:[#allocation9 + $0x28] sm:$0xf]
    %v719 = vld [vmem:[#allocation9 + $0x2c] sm:$0xf]
    %v720 = vld [vmem:[#allocation9 + $0x30] sm:$0xf]
    %v721 = vld [vmem:[#allocation9 + $0x34] sm:$0xf]
    %v722 = vld [vmem:[#allocation9 + $0x38] sm:$0xf]
    %v723 = vld [vmem:[#allocation9 + $0x3c] sm:$0xf]
    %v740 = vunpack.c.l.b16 %v708
    %v741 = vunpack.c.l.b16 %v709
    %v742 = vunpack.c.l.b16 %v710
    %v743 = vunpack.c.l.b16 %v711
    %v744 = vunpack.c.l.b16 %v712
    %v745 = vunpack.c.l.b16 %v713
    %v746 = vunpack.c.l.b16 %v714
    %v747 = vunpack.c.l.b16 %v715
    %v748 = vunpack.c.l.b16 %v716
    %v749 = vunpack.c.l.b16 %v717
    %v750 = vunpack.c.l.b16 %v718
    %v751 = vunpack.c.l.b16 %v719
    %v752 = vunpack.c.l.b16 %v720
    %v753 = vunpack.c.l.b16 %v721
    %v754 = vunpack.c.l.b16 %v722
    %v755 = vunpack.c.l.b16 %v723
    %v756 = vpack.c.b16 %v741, %v740
    %v757 = vpack.c.b16 %v743, %v742
    %v758 = vpack.c.b16 %v745, %v744
    %v759 = vpack.c.b16 %v747, %v746
    %v760 = vpack.c.b16 %v749, %v748
    %v761 = vpack.c.b16 %v751, %v750
    %v762 = vpack.c.b16 %v753, %v752
    %v763 = vpack.c.b16 %v755, %v754
    %772 = vmatpush.bf16.msra.mxu0 %v763
    %773 = vmatpush.bf16.msra.mxu0 %v762
    %774 = vmatpush.bf16.msra.mxu0 %v761
    %775 = vmatpush.bf16.msra.mxu0 %v760
    %776 = vmatpush.bf16.msra.mxu0 %v759
    %777 = vmatpush.bf16.msra.mxu0 %v758
    %778 = vmatpush.bf16.msra.mxu0 %v757
    %779 = vmatpush.bf16.msra.mxu0 %v756
    %780 = vmatmul.bf16.gmra.mxu0 0
    %v781 = vpop.f32.mrf.mxu0
    %v782 = vadd.f32 0.0, %v781
    %v783 = vpop.f32.mrf.mxu0
    %v784 = vadd.f32 0.0, %v783
    %785 = vdwg.mxu0
    %v786 = vadd.f32 %v706, %v782
    %v787 = vadd.f32 %v707, %v784
    %v788 = vtanh.pop %v786
    %v789 = vtanh.pop %v787
    %v790 = vld [vmem:[%s582] sm:$0xff]
    %v791 = vld [vmem:[%s582 + $0x8] sm:$0xff]
    %v792 = vpack.c.bf16 %v789, %v788
    %793 = vmatpush.bf16.msra.mxu0 %v763
    %794 = vmatpush.bf16.msra.mxu0 %v762
    %795 = vmatpush.bf16.msra.mxu0 %v761
    %796 = vmatpush.bf16.msra.mxu0 %v760
    %797 = vmatpush.bf16.msra.mxu0 %v759
    %798 = vmatpush.bf16.msra.mxu0 %v758
    %799 = vmatpush.bf16.msra.mxu0 %v757
    %800 = vmatpush.bf16.msra.mxu0 %v756
    %801 = vmatmul.bf16.gmra.mxu0 %v792
    %v802 = vpop.f32.mrf.mxu0
    %v803 = vadd.f32 0.0, %v802
    %v804 = vpop.f32.mrf.mxu0
    %v805 = vadd.f32 0.0, %v804
    %806 = vdwg.mxu0
    %v807 = vadd.f32 %v790, %v803
    %v808 = vadd.f32 %v791, %v805
    %v809 = vtanh.pop %v807
    %v810 = vtanh.pop %v808
    %v811 = vld [vmem:[%s602] sm:$0xff]
    %v812 = vld [vmem:[%s602 + $0x8] sm:$0xff]
    %v813 = vpack.c.bf16 %v810, %v809
    %814 = vmatpush.bf16.msra.mxu0 %v763
    %815 = vmatpush.bf16.msra.mxu0 %v762
    %816 = vmatpush.bf16.msra.mxu0 %v761
    %817 = vmatpush.bf16.msra.mxu0 %v760
    %818 = vmatpush.bf16.msra.mxu0 %v759
    %819 = vmatpush.bf16.msra.mxu0 %v758
    %820 = vmatpush.bf16.msra.mxu0 %v757
    %821 = vmatpush.bf16.msra.mxu0 %v756
    %822 = vmatmul.bf16.gmra.mxu0 %v813
    %v823 = vpop.f32.mrf.mxu0
    %v824 = vadd.f32 0.0, %v823
    %v825 = vpop.f32.mrf.mxu0
    %v826 = vadd.f32 0.0, %v825
    %827 = vdwg.mxu0
    %v828 = vadd.f32 %v811, %v824
    %v829 = vadd.f32 %v812, %v826
    %v830 = vtanh.pop %v828
    %v831 = vtanh.pop %v829
    %v832 = vld [vmem:[%s622] sm:$0xff]
    %v833 = vld [vmem:[%s622 + $0x8] sm:$0xff]
    %v834 = vpack.c.bf16 %v831, %v830
    %835 = vmatpush.bf16.msra.mxu0 %v763
    %836 = vmatpush.bf16.msra.mxu0 %v762
    %837 = vmatpush.bf16.msra.mxu0 %v761
    %838 = vmatpush.bf16.msra.mxu0 %v760
    %839 = vmatpush.bf16.msra.mxu0 %v759
    %840 = vmatpush.bf16.msra.mxu0 %v758
    %841 = vmatpush.bf16.msra.mxu0 %v757
    %842 = vmatpush.bf16.msra.mxu0 %v756
    %843 = vmatmul.bf16.gmra.mxu0 %v834
    %v844 = vpop.f32.mrf.mxu0
    %v845 = vadd.f32 0.0, %v844
    %v846 = vpop.f32.mrf.mxu0
    %v847 = vadd.f32 0.0, %v846
    %848 = vdwg.mxu0
    %v849 = vadd.f32 %v832, %v845
    %v850 = vadd.f32 %v833, %v847
    %v851 = vtanh.pop %v849
    %v852 = vtanh.pop %v850
    %v853 = vld [vmem:[%s642] sm:$0xff]
    %v854 = vld [vmem:[%s642 + $0x8] sm:$0xff]
    %v855 = vpack.c.bf16 %v852, %v851
    %856 = vmatpush.bf16.msra.mxu0 %v763
    %857 = vmatpush.bf16.msra.mxu0 %v762
    %858 = vmatpush.bf16.msra.mxu0 %v761
    %859 = vmatpush.bf16.msra.mxu0 %v760
    %860 = vmatpush.bf16.msra.mxu0 %v759
    %861 = vmatpush.bf16.msra.mxu0 %v758
    %862 = vmatpush.bf16.msra.mxu0 %v757
    %863 = vmatpush.bf16.msra.mxu0 %v756
    %864 = vmatmul.bf16.gmra.mxu0 %v855
    %v865 = vpop.f32.mrf.mxu0
    %v866 = vadd.f32 0.0, %v865
    %v867 = vpop.f32.mrf.mxu0
    %v868 = vadd.f32 0.0, %v867
    %869 = vdwg.mxu0
    %v870 = vadd.f32 %v853, %v866
    %v871 = vadd.f32 %v854, %v868
    %v872 = vtanh.pop %v870
    %v873 = vtanh.pop %v871
    %v874 = vld [vmem:[%s662] sm:$0xff]
    %v875 = vld [vmem:[%s662 + $0x8] sm:$0xff]
    %v876 = vpack.c.bf16 %v873, %v872
    %877 = vmatpush.bf16.msra.mxu0 %v763
    %878 = vmatpush.bf16.msra.mxu0 %v762
    %879 = vmatpush.bf16.msra.mxu0 %v761
    %880 = vmatpush.bf16.msra.mxu0 %v760
    %881 = vmatpush.bf16.msra.mxu0 %v759
    %882 = vmatpush.bf16.msra.mxu0 %v758
    %883 = vmatpush.bf16.msra.mxu0 %v757
    %884 = vmatpush.bf16.msra.mxu0 %v756
    %885 = vmatmul.bf16.gmra.mxu0 %v876
    %v886 = vpop.f32.mrf.mxu0
    %v887 = vadd.f32 0.0, %v886
    %v888 = vpop.f32.mrf.mxu0
    %v889 = vadd.f32 0.0, %v888
    %890 = vdwg.mxu0
    %v891 = vadd.f32 %v874, %v887
    %v892 = vadd.f32 %v875, %v889
    %v893 = vtanh.pop %v891
    %v894 = vtanh.pop %v892
    %v895 = vld [vmem:[%s682] sm:$0xff]
    %v896 = vld [vmem:[%s682 + $0x8] sm:$0xff]
    %v897 = vpack.c.bf16 %v894, %v893
    %898 = vmatpush.bf16.msra.mxu0 %v763
    %899 = vmatpush.bf16.msra.mxu0 %v762
    %900 = vmatpush.bf16.msra.mxu0 %v761
    %901 = vmatpush.bf16.msra.mxu0 %v760
    %902 = vmatpush.bf16.msra.mxu0 %v759
    %903 = vmatpush.bf16.msra.mxu0 %v758
    %904 = vmatpush.bf16.msra.mxu0 %v757
    %905 = vmatpush.bf16.msra.mxu0 %v756
    %906 = vmatmul.bf16.gmra.mxu0 %v897
    %v907 = vpop.f32.mrf.mxu0
    %v908 = vadd.f32 0.0, %v907
    %v909 = vpop.f32.mrf.mxu0
    %v910 = vadd.f32 0.0, %v909
    %911 = vdwg.mxu0
    %v912 = vadd.f32 %v895, %v908
    %v913 = vadd.f32 %v896, %v910
    %v914 = vtanh.pop %v912
    %v915 = vtanh.pop %v913
    %v916 = vld [vmem:[%s702] sm:$0xff]
    %v917 = vld [vmem:[%s702 + $0x8] sm:$0xff]
    %v918 = vpack.c.bf16 %v915, %v914
    %919 = vmatpush.bf16.msra.mxu0 %v763
    %920 = vmatpush.bf16.msra.mxu0 %v762
    %921 = vmatpush.bf16.msra.mxu0 %v761
    %922 = vmatpush.bf16.msra.mxu0 %v760
    %923 = vmatpush.bf16.msra.mxu0 %v759
    %924 = vmatpush.bf16.msra.mxu0 %v758
    %925 = vmatpush.bf16.msra.mxu0 %v757
    %926 = vmatpush.bf16.msra.mxu0 %v756
    %927 = vmatmul.bf16.gmra.mxu0 %v918
    %v928 = vpop.f32.mrf.mxu0
    %v929 = vadd.f32 0.0, %v928
    %v930 = vpop.f32.mrf.mxu0
    %v931 = vadd.f32 0.0, %v930
    %932 = vdwg.mxu0
    %v933 = vadd.f32 %v916, %v929
    %v934 = vadd.f32 %v917, %v931
    %v935 = vtanh.pop %v933
    %v936 = vtanh.pop %v934
    %v937 = vpack.c.bf16 %v936, %v935
    %v938 = vld [vmem:[#allocation12] sm:$0xff]
    %v939 = vld [vmem:[#allocation12 + $0x8] sm:$0xff]
    %v940 = vld [vmem:[#allocation12 + $0x10] sm:$0xff]
    %v941 = vld [vmem:[#allocation12 + $0x18] sm:$0xff]
    %v942 = vld [vmem:[#allocation12 + $0x20] sm:$0xff]
    %v943 = vld [vmem:[#allocation12 + $0x28] sm:$0xff]
    %v944 = vld [vmem:[#allocation12 + $0x30] sm:$0xff]
    %v945 = vld [vmem:[#allocation12 + $0x38] sm:$0xff]
    %v946 = vld [vmem:[#allocation12 + $0x40] sm:$0xff]
    %v947 = vld [vmem:[#allocation12 + $0x48] sm:$0xff]
    %v948 = vld [vmem:[#allocation12 + $0x50] sm:$0xff]
    %v949 = vld [vmem:[#allocation12 + $0x58] sm:$0xff]
    %v950 = vld [vmem:[#allocation12 + $0x60] sm:$0xff]
    %v951 = vld [vmem:[#allocation12 + $0x68] sm:$0xff]
    %v952 = vld [vmem:[#allocation12 + $0x70] sm:$0xff]
    %v953 = vld [vmem:[#allocation12 + $0x78] sm:$0xff]
    %v954 = vld [vmem:[%s8] sm:$0x3]
    %v956 = vperm.slane %v954, 0
    %v957 = vperm.slane %v954, 1
    %v976 = vunpack.c.l.b16 %v938
    %v977 = vunpack.c.h.b16 %v938
    %v978 = vunpack.c.l.b16 %v939
    %v979 = vunpack.c.h.b16 %v939
    %v980 = vunpack.c.l.b16 %v940
    %v981 = vunpack.c.h.b16 %v940
    %v982 = vunpack.c.l.b16 %v941
    %v983 = vunpack.c.h.b16 %v941
    %v984 = vunpack.c.l.b16 %v942
    %v985 = vunpack.c.h.b16 %v942
    %v986 = vunpack.c.l.b16 %v943
    %v987 = vunpack.c.h.b16 %v943
    %v988 = vunpack.c.l.b16 %v944
    %v989 = vunpack.c.h.b16 %v944
    %v990 = vunpack.c.l.b16 %v945
    %v991 = vunpack.c.h.b16 %v945
    %v992 = vunpack.c.l.b16 %v946
    %v993 = vunpack.c.h.b16 %v946
    %v994 = vunpack.c.l.b16 %v947
    %v995 = vunpack.c.h.b16 %v947
    %v996 = vunpack.c.l.b16 %v948
    %v997 = vunpack.c.h.b16 %v948
    %v998 = vunpack.c.l.b16 %v949
    %v999 = vunpack.c.h.b16 %v949
    %v1000 = vunpack.c.l.b16 %v950
    %v1001 = vunpack.c.h.b16 %v950
    %v1002 = vunpack.c.l.b16 %v951
    %v1003 = vunpack.c.h.b16 %v951
    %v1004 = vunpack.c.l.b16 %v952
    %v1005 = vunpack.c.h.b16 %v952
    %v1006 = vunpack.c.l.b16 %v953
    %v1007 = vunpack.c.h.b16 %v953
    %v1008 = vpack.c.b16 %v978, %v976
    %v1009 = vpack.c.b16 %v979, %v977
    %v1010 = vpack.c.b16 %v982, %v980
    %v1011 = vpack.c.b16 %v983, %v981
    %v1012 = vpack.c.b16 %v986, %v984
    %v1013 = vpack.c.b16 %v987, %v985
    %v1014 = vpack.c.b16 %v990, %v988
    %v1015 = vpack.c.b16 %v991, %v989
    %v1016 = vpack.c.b16 %v994, %v992
    %v1017 = vpack.c.b16 %v995, %v993
    %v1018 = vpack.c.b16 %v998, %v996
    %v1019 = vpack.c.b16 %v999, %v997
    %v1020 = vpack.c.b16 %v1002, %v1000
    %v1021 = vpack.c.b16 %v1003, %v1001
    %v1022 = vpack.c.b16 %v1006, %v1004
    %v1023 = vpack.c.b16 %v1007, %v1005
    %1040 = vmatpush.bf16.msra.mxu0 %v1022
    %1041 = vmatpush.bf16.msra.mxu0 %v1020
    %1042 = vmatpush.bf16.msra.mxu0 %v1018
    %1043 = vmatpush.bf16.msra.mxu0 %v1016
    %1044 = vmatpush.bf16.msra.mxu0 %v1014
    %1045 = vmatpush.bf16.msra.mxu0 %v1012
    %1046 = vmatpush.bf16.msra.mxu0 %v1010
    %1047 = vmatpush.bf16.msra.mxu0 %v1008
    %1048 = vmatmul.bf16.gmra.mxu0 %v937
    %v1049 = vpop.f32.mrf.mxu0
    %v1050 = vadd.f32 %v956, %v1049
    %v1051 = vpop.f32.mrf.mxu0
    %v1052 = vadd.f32 %v956, %v1051
    %1053 = vdwg.mxu0
    %1054 = vmatpush.bf16.msra.mxu0 %v1023
    %1055 = vmatpush.bf16.msra.mxu0 %v1021
    %1056 = vmatpush.bf16.msra.mxu0 %v1019
    %1057 = vmatpush.bf16.msra.mxu0 %v1017
    %1058 = vmatpush.bf16.msra.mxu0 %v1015
    %1059 = vmatpush.bf16.msra.mxu0 %v1013
    %1060 = vmatpush.bf16.msra.mxu0 %v1011
    %1061 = vmatpush.bf16.msra.mxu0 %v1009
    %1062 = vmatmul.bf16.gmra.mxu0 %v937
    %v1063 = vpop.f32.mrf.mxu0
    %v1064 = vadd.f32 %v957, %v1063
    %v1065 = vpop.f32.mrf.mxu0
    %v1066 = vadd.f32 %v957, %v1065
    %1067 = vdwg.mxu0
    %v1068 = vmax.f32 %v1050, 0.0
    %v1069 = vmax.f32 %v1064, 0.0
    %v1070 = vmax.f32 %v1052, 0.0
    %v1071 = vmax.f32 %v1066, 0.0
    %v1072 = vld [vmem:[#allocation4] sm:$0xff]
    %v1073 = vld [vmem:[#allocation4 + $0x8] sm:$0xff]
    %v1074 = vld [vmem:[#allocation4 + $0x10] sm:$0xff]
    %v1075 = vld [vmem:[#allocation4 + $0x18] sm:$0xff]
    %v1076 = vld [vmem:[#allocation4 + $0x20] sm:$0xff]
    %v1077 = vld [vmem:[#allocation4 + $0x28] sm:$0xff]
    %v1078 = vld [vmem:[#allocation4 + $0x30] sm:$0xff]
    %v1079 = vld [vmem:[#allocation4 + $0x38] sm:$0xff]
    %v1080 = vld [vmem:[#allocation4 + $0x40] sm:$0xff]
    %v1081 = vld [vmem:[#allocation4 + $0x48] sm:$0xff]
    %v1082 = vld [vmem:[#allocation4 + $0x50] sm:$0xff]
    %v1083 = vld [vmem:[#allocation4 + $0x58] sm:$0xff]
    %v1084 = vld [vmem:[#allocation4 + $0x60] sm:$0xff]
    %v1085 = vld [vmem:[#allocation4 + $0x68] sm:$0xff]
    %v1086 = vld [vmem:[#allocation4 + $0x70] sm:$0xff]
    %v1087 = vld [vmem:[#allocation4 + $0x78] sm:$0xff]
    %v1088 = vpack.c.bf16 %v1073, %v1072
    %v1089 = vpack.c.bf16 %v1075, %v1074
    %v1090 = vpack.c.bf16 %v1077, %v1076
    %v1091 = vpack.c.bf16 %v1079, %v1078
    %v1092 = vpack.c.bf16 %v1081, %v1080
    %v1093 = vpack.c.bf16 %v1083, %v1082
    %v1094 = vpack.c.bf16 %v1085, %v1084
    %v1095 = vpack.c.bf16 %v1087, %v1086
    %v1096 = vld [vmem:[#allocation10] sm:$0xf]
    %v1097 = vld [vmem:[#allocation10 + $0x4] sm:$0xf]
    %v1098 = vld [vmem:[#allocation10 + $0x8] sm:$0xf]
    %v1099 = vld [vmem:[#allocation10 + $0xc] sm:$0xf]
    %v1100 = vld [vmem:[#allocation10 + $0x10] sm:$0xf]
    %v1101 = vld [vmem:[#allocation10 + $0x14] sm:$0xf]
    %v1102 = vld [vmem:[#allocation10 + $0x18] sm:$0xf]
    %v1103 = vld [vmem:[#allocation10 + $0x1c] sm:$0xf]
    %v1104 = vld [vmem:[#allocation10 + $0x20] sm:$0xf]
    %v1105 = vld [vmem:[#allocation10 + $0x24] sm:$0xf]
    %v1106 = vld [vmem:[#allocation10 + $0x28] sm:$0xf]
    %v1107 = vld [vmem:[#allocation10 + $0x2c] sm:$0xf]
    %v1108 = vld [vmem:[#allocation10 + $0x30] sm:$0xf]
    %v1109 = vld [vmem:[#allocation10 + $0x34] sm:$0xf]
    %v1110 = vld [vmem:[#allocation10 + $0x38] sm:$0xf]
    %v1111 = vld [vmem:[#allocation10 + $0x3c] sm:$0xf]
    %v1112 = vld [vmem:[%s6] sm:$0x1]
    %v1114 = vperm.slane %v1112, 0
    %v1132 = vunpack.c.l.b16 %v1096
    %v1133 = vunpack.c.l.b16 %v1097
    %v1134 = vunpack.c.l.b16 %v1098
    %v1135 = vunpack.c.l.b16 %v1099
    %v1136 = vunpack.c.l.b16 %v1100
    %v1137 = vunpack.c.l.b16 %v1101
    %v1138 = vunpack.c.l.b16 %v1102
    %v1139 = vunpack.c.l.b16 %v1103
    %v1140 = vunpack.c.l.b16 %v1104
    %v1141 = vunpack.c.l.b16 %v1105
    %v1142 = vunpack.c.l.b16 %v1106
    %v1143 = vunpack.c.l.b16 %v1107
    %v1144 = vunpack.c.l.b16 %v1108
    %v1145 = vunpack.c.l.b16 %v1109
    %v1146 = vunpack.c.l.b16 %v1110
    %v1147 = vunpack.c.l.b16 %v1111
    %v1148 = vpack.c.b16 %v1133, %v1132
    %v1149 = vpack.c.b16 %v1135, %v1134
    %v1150 = vpack.c.b16 %v1137, %v1136
    %v1151 = vpack.c.b16 %v1139, %v1138
    %v1152 = vpack.c.b16 %v1141, %v1140
    %v1153 = vpack.c.b16 %v1143, %v1142
    %v1154 = vpack.c.b16 %v1145, %v1144
    %v1155 = vpack.c.b16 %v1147, %v1146
    %1164 = vmatpush.bf16.msra.mxu0 %v1155
    %1165 = vmatpush.bf16.msra.mxu0 %v1154
    %1166 = vmatpush.bf16.msra.mxu0 %v1153
    %1167 = vmatpush.bf16.msra.mxu0 %v1152
    %1168 = vmatpush.bf16.msra.mxu0 %v1151
    %1169 = vmatpush.bf16.msra.mxu0 %v1150
    %1170 = vmatpush.bf16.msra.mxu0 %v1149
    %1171 = vmatpush.bf16.msra.mxu0 %v1148
    %1172 = vmatmul.bf16.gmra.mxu0 %v1088
    %v1173 = vpop.f32.mrf.mxu0
    %v1174 = vadd.f32 %v1114, %v1173
    %v1175 = vpop.f32.mrf.mxu0
    %v1176 = vadd.f32 %v1114, %v1175
    %1177 = vmatmul.bf16.gmra.mxu0 %v1089
    %v1178 = vpop.f32.mrf.mxu0
    %v1179 = vadd.f32 %v1114, %v1178
    %v1180 = vpop.f32.mrf.mxu0
    %v1181 = vadd.f32 %v1114, %v1180
    %1182 = vmatmul.bf16.gmra.mxu0 %v1090
    %v1183 = vpop.f32.mrf.mxu0
    %v1184 = vadd.f32 %v1114, %v1183
    %v1185 = vpop.f32.mrf.mxu0
    %v1186 = vadd.f32 %v1114, %v1185
    %1187 = vmatmul.bf16.gmra.mxu0 %v1091
    %v1188 = vpop.f32.mrf.mxu0
    %v1189 = vadd.f32 %v1114, %v1188
    %v1190 = vpop.f32.mrf.mxu0
    %v1191 = vadd.f32 %v1114, %v1190
    %1192 = vmatmul.bf16.gmra.mxu0 %v1092
    %v1193 = vpop.f32.mrf.mxu0
    %v1194 = vadd.f32 %v1114, %v1193
    %v1195 = vpop.f32.mrf.mxu0
    %v1196 = vadd.f32 %v1114, %v1195
    %1197 = vmatmul.bf16.gmra.mxu0 %v1093
    %v1198 = vpop.f32.mrf.mxu0
    %v1199 = vadd.f32 %v1114, %v1198
    %v1200 = vpop.f32.mrf.mxu0
    %v1201 = vadd.f32 %v1114, %v1200
    %1202 = vmatmul.bf16.gmra.mxu0 %v1094
    %v1203 = vpop.f32.mrf.mxu0
    %v1204 = vadd.f32 %v1114, %v1203
    %v1205 = vpop.f32.mrf.mxu0
    %v1206 = vadd.f32 %v1114, %v1205
    %1207 = vmatmul.bf16.gmra.mxu0 %v1095
    %v1208 = vpop.f32.mrf.mxu0
    %v1209 = vadd.f32 %v1114, %v1208
    %v1210 = vpop.f32.mrf.mxu0
    %v1211 = vadd.f32 %v1114, %v1210
    %1212 = vdwg.mxu0
    %v1213 = vmax.f32 %v1174, 0.0
    %v1214 = vmax.f32 %v1176, 0.0
    %v1215 = vmax.f32 %v1179, 0.0
    %v1216 = vmax.f32 %v1181, 0.0
    %v1217 = vmax.f32 %v1184, 0.0
    %v1218 = vmax.f32 %v1186, 0.0
    %v1219 = vmax.f32 %v1189, 0.0
    %v1220 = vmax.f32 %v1191, 0.0
    %v1221 = vmax.f32 %v1194, 0.0
    %v1222 = vmax.f32 %v1196, 0.0
    %v1223 = vmax.f32 %v1199, 0.0
    %v1224 = vmax.f32 %v1201, 0.0
    %v1225 = vmax.f32 %v1204, 0.0
    %v1226 = vmax.f32 %v1206, 0.0
    %v1227 = vmax.f32 %v1209, 0.0
    %v1228 = vmax.f32 %v1211, 0.0
    %v1229 = vld [vmem:[%s9] sm:$0x1]
    %v1231 = vperm.slane %v1229, 0
    %v1233 = vmul.f32 %v1068, %v1231
    %v1234 = vmul.f32 %v1070, %v1231
    %v1237 = vrot.slane %v1233, 1
    %v1238 = vrot.slane %v1233, 2
    %v1239 = vrot.slane %v1233, 3
    %v1240 = vrot.slane %v1233, 4
    %v1241 = vrot.slane %v1233, 5
    %v1242 = vrot.slane %v1233, 6
    %v1243 = vrot.slane %v1233, 7
    %v1244 = vrot.slane %v1234, 1
    %v1245 = vrot.slane %v1234, 2
    %v1246 = vrot.slane %v1234, 3
    %v1247 = vrot.slane %v1234, 4
    %v1248 = vrot.slane %v1234, 5
    %v1249 = vrot.slane %v1234, 6
    %v1250 = vrot.slane %v1234, 7
    %v1251 = vperm.slane %v1233, 0
    %v1252 = vperm.slane %v1237, 0
    %v1253 = vperm.slane %v1238, 0
    %v1254 = vperm.slane %v1239, 0
    %v1255 = vperm.slane %v1240, 0
    %v1256 = vperm.slane %v1241, 0
    %v1257 = vperm.slane %v1242, 0
    %v1258 = vperm.slane %v1243, 0
    %v1259 = vperm.slane %v1234, 0
    %v1260 = vperm.slane %v1244, 0
    %v1261 = vperm.slane %v1245, 0
    %v1262 = vperm.slane %v1246, 0
    %v1263 = vperm.slane %v1247, 0
    %v1264 = vperm.slane %v1248, 0
    %v1265 = vperm.slane %v1249, 0
    %v1266 = vperm.slane %v1250, 0
    %v1283 = vmul.f32 %v1213, %v1251
    %v1284 = vmul.f32 %v1214, %v1252
    %v1285 = vmul.f32 %v1215, %v1253
    %v1286 = vmul.f32 %v1216, %v1254
    %v1287 = vmul.f32 %v1217, %v1255
    %v1288 = vmul.f32 %v1218, %v1256
    %v1289 = vmul.f32 %v1219, %v1257
    %v1290 = vmul.f32 %v1220, %v1258
    %v1291 = vmul.f32 %v1221, %v1259
    %v1292 = vmul.f32 %v1222, %v1260
    %v1293 = vmul.f32 %v1223, %v1261
    %v1294 = vmul.f32 %v1224, %v1262
    %v1295 = vmul.f32 %v1225, %v1263
    %v1296 = vmul.f32 %v1226, %v1264
    %v1297 = vmul.f32 %v1227, %v1265
    %v1298 = vmul.f32 %v1228, %v1266
    %1299 = vadd.xlane.f32.xlu0 %v1283
    %v1300 = vpop.xlane.xlu0 %1299
    %1301 = vadd.xlane.f32.xlu0 %v1284
    %v1302 = vpop.xlane.xlu0 %1301
    %1303 = vadd.xlane.f32.xlu0 %v1285
    %v1304 = vpop.xlane.xlu0 %1303
    %1305 = vadd.xlane.f32.xlu0 %v1286
    %v1306 = vpop.xlane.xlu0 %1305
    %1307 = vadd.xlane.f32.xlu0 %v1287
    %v1308 = vpop.xlane.xlu0 %1307
    %1309 = vadd.xlane.f32.xlu0 %v1288
    %v1310 = vpop.xlane.xlu0 %1309
    %1311 = vadd.xlane.f32.xlu0 %v1289
    %v1312 = vpop.xlane.xlu0 %1311
    %1313 = vadd.xlane.f32.xlu0 %v1290
    %v1314 = vpop.xlane.xlu0 %1313
    %1315 = vadd.xlane.f32.xlu0 %v1291
    %v1316 = vpop.xlane.xlu0 %1315
    %1317 = vadd.xlane.f32.xlu0 %v1292
    %v1318 = vpop.xlane.xlu0 %1317
    %1319 = vadd.xlane.f32.xlu0 %v1293
    %v1320 = vpop.xlane.xlu0 %1319
    %1321 = vadd.xlane.f32.xlu0 %v1294
    %v1322 = vpop.xlane.xlu0 %1321
    %1323 = vadd.xlane.f32.xlu0 %v1295
    %v1324 = vpop.xlane.xlu0 %1323
    %1325 = vadd.xlane.f32.xlu0 %v1296
    %v1326 = vpop.xlane.xlu0 %1325
    %1327 = vadd.xlane.f32.xlu0 %v1297
    %v1328 = vpop.xlane.xlu0 %1327
    %1329 = vadd.xlane.f32.xlu0 %v1298
    %v1330 = vpop.xlane.xlu0 %1329
    %s1331 = sld [smem:[#allocation3]]
    %v1332 = vstv %s1331
    %v1333 = vadd.f32 %v1300, %v1332
    %v1334 = vadd.f32 %v1302, %v1332
    %v1335 = vadd.f32 %v1304, %v1332
    %v1336 = vadd.f32 %v1306, %v1332
    %v1337 = vadd.f32 %v1308, %v1332
    %v1338 = vadd.f32 %v1310, %v1332
    %v1339 = vadd.f32 %v1312, %v1332
    %v1340 = vadd.f32 %v1314, %v1332
    %v1341 = vadd.f32 %v1316, %v1332
    %v1342 = vadd.f32 %v1318, %v1332
    %v1343 = vadd.f32 %v1320, %v1332
    %v1344 = vadd.f32 %v1322, %v1332
    %v1345 = vadd.f32 %v1324, %v1332
    %v1346 = vadd.f32 %v1326, %v1332
    %v1347 = vadd.f32 %v1328, %v1332
    %v1348 = vadd.f32 %v1330, %v1332
    %v1365 = vperm.slane %v1333, %v169
    %v1366 = vperm.slane %v1334, %v169
    %v1367 = vperm.slane %v1335, %v169
    %v1368 = vperm.slane %v1336, %v169
    %v1369 = vperm.slane %v1337, %v169
    %v1370 = vperm.slane %v1338, %v169
    %v1371 = vperm.slane %v1339, %v169
    %v1372 = vperm.slane %v1340, %v169
    %v1373 = vperm.slane %v1341, %v169
    %v1374 = vperm.slane %v1342, %v169
    %v1375 = vperm.slane %v1343, %v169
    %v1376 = vperm.slane %v1344, %v169
    %v1377 = vperm.slane %v1345, %v169
    %v1378 = vperm.slane %v1346, %v169
    %v1379 = vperm.slane %v1347, %v169
    %v1380 = vperm.slane %v1348, %v169
    %v1381 = vsel %vm528, %v1366, %v1365
    %v1382 = vsel %vm531, %v1367, %v1381
    %v1383 = vsel %vm534, %v1368, %v1382
    %v1384 = vsel %vm537, %v1369, %v1383
    %v1385 = vsel %vm540, %v1370, %v1384
    %v1386 = vsel %vm543, %v1371, %v1385
    %v1387 = vsel %vm546, %v1372, %v1386
    %v1388 = vsel %vm528, %v1374, %v1373
    %v1389 = vsel %vm531, %v1375, %v1388
    %v1390 = vsel %vm534, %v1376, %v1389
    %v1391 = vsel %vm537, %v1377, %v1390
    %v1392 = vsel %vm540, %v1378, %v1391
    %v1393 = vsel %vm543, %v1379, %v1392
    %v1394 = vsel %vm546, %v1380, %v1393
    %vm1397 = vcmask 64512
    %v1398 = vsel %vm1397, %v1387, -inf
    %1399 = vmax.xlane.f32.xlu0 %v1398
    %v1400 = vpop.xlane.xlu0 %1399
    %v1401 = vsel %vm1397, %v1394, -inf
    %1402 = vmax.xlane.f32.xlu0 %v1401
    %v1403 = vpop.xlane.xlu0 %1402
    %v1406 = vperm.slane %v1400, 0
    %v1407 = vperm.slane %v1400, 1
    %v1408 = vperm.slane %v1400, 2
    %v1409 = vperm.slane %v1400, 3
    %v1410 = vperm.slane %v1400, 4
    %v1411 = vperm.slane %v1400, 5
    %v1412 = vperm.slane %v1400, 6
    %v1413 = vperm.slane %v1400, 7
    %v1414 = vperm.slane %v1403, 0
    %v1415 = vperm.slane %v1403, 1
    %v1416 = vperm.slane %v1403, 2
    %v1417 = vperm.slane %v1403, 3
    %v1418 = vperm.slane %v1403, 4
    %v1419 = vperm.slane %v1403, 5
    %v1420 = vperm.slane %v1403, 6
    %v1421 = vperm.slane %v1403, 7
    %v1438 = vsub.f32 %v1333, %v1406
    %v1439 = vsub.f32 %v1334, %v1407
    %v1440 = vsub.f32 %v1335, %v1408
    %v1441 = vsub.f32 %v1336, %v1409
    %v1442 = vsub.f32 %v1337, %v1410
    %v1443 = vsub.f32 %v1338, %v1411
    %v1444 = vsub.f32 %v1339, %v1412
    %v1445 = vsub.f32 %v1340, %v1413
    %v1446 = vsub.f32 %v1341, %v1414
    %v1447 = vsub.f32 %v1342, %v1415
    %v1448 = vsub.f32 %v1343, %v1416
    %v1449 = vsub.f32 %v1344, %v1417
    %v1450 = vsub.f32 %v1345, %v1418
    %v1451 = vsub.f32 %v1346, %v1419
    %v1452 = vsub.f32 %v1347, %v1420
    %v1453 = vsub.f32 %v1348, %v1421
    %v1454 = vmul.f32 %v1438, 1.442695
    %v1455 = vpow.pop %v1454
    %v1456 = vmul.f32 %v1439, 1.442695
    %v1457 = vpow.pop %v1456
    %v1458 = vmul.f32 %v1440, 1.442695
    %v1459 = vpow.pop %v1458
    %v1460 = vmul.f32 %v1441, 1.442695
    %v1461 = vpow.pop %v1460
    %v1462 = vmul.f32 %v1442, 1.442695
    %v1463 = vpow.pop %v1462
    %v1464 = vmul.f32 %v1443, 1.442695
    %v1465 = vpow.pop %v1464
    %v1466 = vmul.f32 %v1444, 1.442695
    %v1467 = vpow.pop %v1466
    %v1468 = vmul.f32 %v1445, 1.442695
    %v1469 = vpow.pop %v1468
    %v1470 = vmul.f32 %v1446, 1.442695
    %v1471 = vpow.pop %v1470
    %v1472 = vmul.f32 %v1447, 1.442695
    %v1473 = vpow.pop %v1472
    %v1474 = vmul.f32 %v1448, 1.442695
    %v1475 = vpow.pop %v1474
    %v1476 = vmul.f32 %v1449, 1.442695
    %v1477 = vpow.pop %v1476
    %v1478 = vmul.f32 %v1450, 1.442695
    %v1479 = vpow.pop %v1478
    %v1480 = vmul.f32 %v1451, 1.442695
    %v1481 = vpow.pop %v1480
    %v1482 = vmul.f32 %v1452, 1.442695
    %v1483 = vpow.pop %v1482
    %v1484 = vmul.f32 %v1453, 1.442695
    %v1485 = vpow.pop %v1484
    %1502 = vset.pattern.permute.xlu0 0
    %1503 = vperm.xlu0 %1502, %v1455
    %v1504 = vpop.permute.xlu0 %1503
    %1505 = vset.pattern.permute.xlu0 0
    %1506 = vperm.xlu0 %1505, %v1457
    %v1507 = vpop.permute.xlu0 %1506
    %1508 = vset.pattern.permute.xlu0 0
    %1509 = vperm.xlu0 %1508, %v1459
    %v1510 = vpop.permute.xlu0 %1509
    %1511 = vset.pattern.permute.xlu0 0
    %1512 = vperm.xlu0 %1511, %v1461
    %v1513 = vpop.permute.xlu0 %1512
    %1514 = vset.pattern.permute.xlu0 0
    %1515 = vperm.xlu0 %1514, %v1463
    %v1516 = vpop.permute.xlu0 %1515
    %1517 = vset.pattern.permute.xlu0 0
    %1518 = vperm.xlu0 %1517, %v1465
    %v1519 = vpop.permute.xlu0 %1518
    %1520 = vset.pattern.permute.xlu0 0
    %1521 = vperm.xlu0 %1520, %v1467
    %v1522 = vpop.permute.xlu0 %1521
    %1523 = vset.pattern.permute.xlu0 0
    %1524 = vperm.xlu0 %1523, %v1469
    %v1525 = vpop.permute.xlu0 %1524
    %1526 = vset.pattern.permute.xlu0 0
    %1527 = vperm.xlu0 %1526, %v1471
    %v1528 = vpop.permute.xlu0 %1527
    %1529 = vset.pattern.permute.xlu0 0
    %1530 = vperm.xlu0 %1529, %v1473
    %v1531 = vpop.permute.xlu0 %1530
    %1532 = vset.pattern.permute.xlu0 0
    %1533 = vperm.xlu0 %1532, %v1475
    %v1534 = vpop.permute.xlu0 %1533
    %1535 = vset.pattern.permute.xlu0 0
    %1536 = vperm.xlu0 %1535, %v1477
    %v1537 = vpop.permute.xlu0 %1536
    %1538 = vset.pattern.permute.xlu0 0
    %1539 = vperm.xlu0 %1538, %v1479
    %v1540 = vpop.permute.xlu0 %1539
    %1541 = vset.pattern.permute.xlu0 0
    %1542 = vperm.xlu0 %1541, %v1481
    %v1543 = vpop.permute.xlu0 %1542
    %1544 = vset.pattern.permute.xlu0 0
    %1545 = vperm.xlu0 %1544, %v1483
    %v1546 = vpop.permute.xlu0 %1545
    %1547 = vset.pattern.permute.xlu0 0
    %1548 = vperm.xlu0 %1547, %v1485
    %v1549 = vpop.permute.xlu0 %1548
    %v1550 = vperm.slane %v1504, %v169
    %v1551 = vperm.slane %v1507, %v169
    %v1552 = vperm.slane %v1510, %v169
    %v1553 = vperm.slane %v1513, %v169
    %v1554 = vperm.slane %v1516, %v169
    %v1555 = vperm.slane %v1519, %v169
    %v1556 = vperm.slane %v1522, %v169
    %v1557 = vperm.slane %v1525, %v169
    %v1558 = vperm.slane %v1528, %v169
    %v1559 = vperm.slane %v1531, %v169
    %v1560 = vperm.slane %v1534, %v169
    %v1561 = vperm.slane %v1537, %v169
    %v1562 = vperm.slane %v1540, %v169
    %v1563 = vperm.slane %v1543, %v169
    %v1564 = vperm.slane %v1546, %v169
    %v1565 = vperm.slane %v1549, %v169
    %v1566 = vsel %vm528, %v1551, %v1550
    %v1567 = vsel %vm531, %v1552, %v1566
    %v1568 = vsel %vm534, %v1553, %v1567
    %v1569 = vsel %vm537, %v1554, %v1568
    %v1570 = vsel %vm540, %v1555, %v1569
    %v1571 = vsel %vm543, %v1556, %v1570
    %v1572 = vsel %vm546, %v1557, %v1571
    %v1573 = vsel %vm528, %v1559, %v1558
    %v1574 = vsel %vm531, %v1560, %v1573
    %v1575 = vsel %vm534, %v1561, %v1574
    %v1576 = vsel %vm537, %v1562, %v1575
    %v1577 = vsel %vm540, %v1563, %v1576
    %v1578 = vsel %vm543, %v1564, %v1577
    %v1579 = vsel %vm546, %v1565, %v1578
    %v1582 = vsel %vm1397, %v1572, 0.0
    %1583 = vadd.xlane.f32.xlu0 %v1582
    %v1584 = vpop.xlane.xlu0 %1583
    %v1585 = vsel %vm1397, %v1579, 0.0
    %1586 = vadd.xlane.f32.xlu0 %v1585
    %v1587 = vpop.xlane.xlu0 %1586
    %v1588 = vrcp.pop %v1584
    %v1589 = vrcp.pop %v1587
    %v1592 = vperm.slane %v1588, 0
    %v1593 = vperm.slane %v1588, 1
    %v1594 = vperm.slane %v1588, 2
    %v1595 = vperm.slane %v1588, 3
    %v1596 = vperm.slane %v1588, 4
    %v1597 = vperm.slane %v1588, 5
    %v1598 = vperm.slane %v1588, 6
    %v1599 = vperm.slane %v1588, 7
    %v1600 = vperm.slane %v1589, 0
    %v1601 = vperm.slane %v1589, 1
    %v1602 = vperm.slane %v1589, 2
    %v1603 = vperm.slane %v1589, 3
    %v1604 = vperm.slane %v1589, 4
    %v1605 = vperm.slane %v1589, 5
    %v1606 = vperm.slane %v1589, 6
    %v1607 = vperm.slane %v1589, 7
    %v1624 = vmul.f32 %v1455, %v1592
    %v1625 = vmul.f32 %v1457, %v1593
    %v1626 = vmul.f32 %v1459, %v1594
    %v1627 = vmul.f32 %v1461, %v1595
    %v1628 = vmul.f32 %v1463, %v1596
    %v1629 = vmul.f32 %v1465, %v1597
    %v1630 = vmul.f32 %v1467, %v1598
    %v1631 = vmul.f32 %v1469, %v1599
    %v1632 = vmul.f32 %v1471, %v1600
    %v1633 = vmul.f32 %v1473, %v1601
    %v1634 = vmul.f32 %v1475, %v1602
    %v1635 = vmul.f32 %v1477, %v1603
    %v1636 = vmul.f32 %v1479, %v1604
    %v1637 = vmul.f32 %v1481, %v1605
    %v1638 = vmul.f32 %v1483, %v1606
    %v1639 = vmul.f32 %v1485, %v1607
    %1641 = vset.pattern.permute.xlu0 0
    %1642 = vperm.xlu0 %1641, %v1624
    %v1643 = vpop.permute.xlu0 %1642
    %1646 = vset.pattern.permute.xlu0 0
    %1647 = vperm.xlu0 %1646, %v1625
    %v1648 = vpop.permute.xlu0 %1647
    %1651 = vset.pattern.permute.xlu0 0
    %1652 = vperm.xlu0 %1651, %v1626
    %v1653 = vpop.permute.xlu0 %1652
    %1656 = vset.pattern.permute.xlu0 0
    %1657 = vperm.xlu0 %1656, %v1627
    %v1658 = vpop.permute.xlu0 %1657
    %1661 = vset.pattern.permute.xlu0 0
    %1662 = vperm.xlu0 %1661, %v1628
    %v1663 = vpop.permute.xlu0 %1662
    %1666 = vset.pattern.permute.xlu0 0
    %1667 = vperm.xlu0 %1666, %v1629
    %v1668 = vpop.permute.xlu0 %1667
    %1671 = vset.pattern.permute.xlu0 0
    %1672 = vperm.xlu0 %1671, %v1630
    %v1673 = vpop.permute.xlu0 %1672
    %1676 = vset.pattern.permute.xlu0 0
    %1677 = vperm.xlu0 %1676, %v1631
    %v1678 = vpop.permute.xlu0 %1677
    %1681 = vset.pattern.permute.xlu0 0
    %1682 = vperm.xlu0 %1681, %v1632
    %v1683 = vpop.permute.xlu0 %1682
    %1686 = vset.pattern.permute.xlu0 0
    %1687 = vperm.xlu0 %1686, %v1633
    %v1688 = vpop.permute.xlu0 %1687
    %1691 = vset.pattern.permute.xlu0 0
    %1692 = vperm.xlu0 %1691, %v1634
    %v1693 = vpop.permute.xlu0 %1692
    %1696 = vset.pattern.permute.xlu0 0
    %1697 = vperm.xlu0 %1696, %v1635
    %v1698 = vpop.permute.xlu0 %1697
    %1701 = vset.pattern.permute.xlu0 0
    %1702 = vperm.xlu0 %1701, %v1636
    %v1703 = vpop.permute.xlu0 %1702
    %1706 = vset.pattern.permute.xlu0 0
    %1707 = vperm.xlu0 %1706, %v1637
    %v1708 = vpop.permute.xlu0 %1707
    %1711 = vset.pattern.permute.xlu0 0
    %1712 = vperm.xlu0 %1711, %v1638
    %v1713 = vpop.permute.xlu0 %1712
    %1716 = vset.pattern.permute.xlu0 0
    %1717 = vperm.xlu0 %1716, %v1639
    %v1718 = vpop.permute.xlu0 %1717
    %v1720 = vmul.f32 %v1643, %v1072
    %v1721 = vmul.f32 %v1648, %v1073
    %v1722 = vmul.f32 %v1653, %v1074
    %v1723 = vmul.f32 %v1658, %v1075
    %v1724 = vmul.f32 %v1663, %v1076
    %v1725 = vmul.f32 %v1668, %v1077
    %v1726 = vmul.f32 %v1673, %v1078
    %v1727 = vmul.f32 %v1678, %v1079
    %v1728 = vmul.f32 %v1683, %v1080
    %v1729 = vmul.f32 %v1688, %v1081
    %v1730 = vmul.f32 %v1693, %v1082
    %v1731 = vmul.f32 %v1698, %v1083
    %v1732 = vmul.f32 %v1703, %v1084
    %v1733 = vmul.f32 %v1708, %v1085
    %v1734 = vmul.f32 %v1713, %v1086
    %v1735 = vmul.f32 %v1718, %v1087
    %v1736 = vrot.slane %v1720, 4
    %v1737 = vadd.f32 %v1720, %v1736
    %v1738 = vrot.slane %v1737, 2
    %v1739 = vadd.f32 %v1737, %v1738
    %v1740 = vrot.slane %v1739, 1
    %v1741 = vadd.f32 %v1739, %v1740
    %v1742 = vrot.slane %v1721, 4
    %v1743 = vadd.f32 %v1721, %v1742
    %v1744 = vrot.slane %v1743, 2
    %v1745 = vadd.f32 %v1743, %v1744
    %v1746 = vrot.slane %v1745, 1
    %v1747 = vadd.f32 %v1745, %v1746
    %v1748 = vrot.slane %v1722, 4
    %v1749 = vadd.f32 %v1722, %v1748
    %v1750 = vrot.slane %v1749, 2
    %v1751 = vadd.f32 %v1749, %v1750
    %v1752 = vrot.slane %v1751, 1
    %v1753 = vadd.f32 %v1751, %v1752
    %v1754 = vrot.slane %v1723, 4
    %v1755 = vadd.f32 %v1723, %v1754
    %v1756 = vrot.slane %v1755, 2
    %v1757 = vadd.f32 %v1755, %v1756
    %v1758 = vrot.slane %v1757, 1
    %v1759 = vadd.f32 %v1757, %v1758
    %v1760 = vrot.slane %v1724, 4
    %v1761 = vadd.f32 %v1724, %v1760
    %v1762 = vrot.slane %v1761, 2
    %v1763 = vadd.f32 %v1761, %v1762
    %v1764 = vrot.slane %v1763, 1
    %v1765 = vadd.f32 %v1763, %v1764
    %v1766 = vrot.slane %v1725, 4
    %v1767 = vadd.f32 %v1725, %v1766
    %v1768 = vrot.slane %v1767, 2
    %v1769 = vadd.f32 %v1767, %v1768
    %v1770 = vrot.slane %v1769, 1
    %v1771 = vadd.f32 %v1769, %v1770
    %v1772 = vrot.slane %v1726, 4
    %v1773 = vadd.f32 %v1726, %v1772
    %v1774 = vrot.slane %v1773, 2
    %v1775 = vadd.f32 %v1773, %v1774
    %v1776 = vrot.slane %v1775, 1
    %v1777 = vadd.f32 %v1775, %v1776
    %v1778 = vrot.slane %v1727, 4
    %v1779 = vadd.f32 %v1727, %v1778
    %v1780 = vrot.slane %v1779, 2
    %v1781 = vadd.f32 %v1779, %v1780
    %v1782 = vrot.slane %v1781, 1
    %v1783 = vadd.f32 %v1781, %v1782
    %v1784 = vrot.slane %v1728, 4
    %v1785 = vadd.f32 %v1728, %v1784
    %v1786 = vrot.slane %v1785, 2
    %v1787 = vadd.f32 %v1785, %v1786
    %v1788 = vrot.slane %v1787, 1
    %v1789 = vadd.f32 %v1787, %v1788
    %v1790 = vrot.slane %v1729, 4
    %v1791 = vadd.f32 %v1729, %v1790
    %v1792 = vrot.slane %v1791, 2
    %v1793 = vadd.f32 %v1791, %v1792
    %v1794 = vrot.slane %v1793, 1
    %v1795 = vadd.f32 %v1793, %v1794
    %v1796 = vrot.slane %v1730, 4
    %v1797 = vadd.f32 %v1730, %v1796
    %v1798 = vrot.slane %v1797, 2
    %v1799 = vadd.f32 %v1797, %v1798
    %v1800 = vrot.slane %v1799, 1
    %v1801 = vadd.f32 %v1799, %v1800
    %v1802 = vrot.slane %v1731, 4
    %v1803 = vadd.f32 %v1731, %v1802
    %v1804 = vrot.slane %v1803, 2
    %v1805 = vadd.f32 %v1803, %v1804
    %v1806 = vrot.slane %v1805, 1
    %v1807 = vadd.f32 %v1805, %v1806
    %v1808 = vrot.slane %v1732, 4
    %v1809 = vadd.f32 %v1732, %v1808
    %v1810 = vrot.slane %v1809, 2
    %v1811 = vadd.f32 %v1809, %v1810
    %v1812 = vrot.slane %v1811, 1
    %v1813 = vadd.f32 %v1811, %v1812
    %v1814 = vrot.slane %v1733, 4
    %v1815 = vadd.f32 %v1733, %v1814
    %v1816 = vrot.slane %v1815, 2
    %v1817 = vadd.f32 %v1815, %v1816
    %v1818 = vrot.slane %v1817, 1
    %v1819 = vadd.f32 %v1817, %v1818
    %v1820 = vrot.slane %v1734, 4
    %v1821 = vadd.f32 %v1734, %v1820
    %v1822 = vrot.slane %v1821, 2
    %v1823 = vadd.f32 %v1821, %v1822
    %v1824 = vrot.slane %v1823, 1
    %v1825 = vadd.f32 %v1823, %v1824
    %v1826 = vrot.slane %v1735, 4
    %v1827 = vadd.f32 %v1735, %v1826
    %v1828 = vrot.slane %v1827, 2
    %v1829 = vadd.f32 %v1827, %v1828
    %v1830 = vrot.slane %v1829, 1
    %v1831 = vadd.f32 %v1829, %v1830
    %v1832 = vpack.c.bf16 %v1741, %v1741
    %v1833 = vpack.c.bf16 %v1747, %v1747
    %v1834 = vpack.c.bf16 %v1753, %v1753
    %v1835 = vpack.c.bf16 %v1759, %v1759
    %v1836 = vpack.c.bf16 %v1765, %v1765
    %v1837 = vpack.c.bf16 %v1771, %v1771
    %v1838 = vpack.c.bf16 %v1777, %v1777
    %v1839 = vpack.c.bf16 %v1783, %v1783
    %v1840 = vpack.c.bf16 %v1789, %v1789
    %v1841 = vpack.c.bf16 %v1795, %v1795
    %v1842 = vpack.c.bf16 %v1801, %v1801
    %v1843 = vpack.c.bf16 %v1807, %v1807
    %v1844 = vpack.c.bf16 %v1813, %v1813
    %v1845 = vpack.c.bf16 %v1819, %v1819
    %v1846 = vpack.c.bf16 %v1825, %v1825
    %v1847 = vpack.c.bf16 %v1831, %v1831
    %v1848 = vld [vmem:[#allocation13] sm:$0xf]
    %v1849 = vld [vmem:[#allocation13 + $0x4] sm:$0xf]
    %v1850 = vld [vmem:[#allocation13 + $0x8] sm:$0xf]
    %v1851 = vld [vmem:[#allocation13 + $0xc] sm:$0xf]
    %v1852 = vld [vmem:[#allocation13 + $0x10] sm:$0xf]
    %v1853 = vld [vmem:[#allocation13 + $0x14] sm:$0xf]
    %v1854 = vld [vmem:[#allocation13 + $0x18] sm:$0xf]
    %v1855 = vld [vmem:[#allocation13 + $0x1c] sm:$0xf]
    %v1856 = vld [vmem:[#allocation13 + $0x20] sm:$0xf]
    %v1857 = vld [vmem:[#allocation13 + $0x24] sm:$0xf]
    %v1858 = vld [vmem:[#allocation13 + $0x28] sm:$0xf]
    %v1859 = vld [vmem:[#allocation13 + $0x2c] sm:$0xf]
    %v1860 = vld [vmem:[#allocation13 + $0x30] sm:$0xf]
    %v1861 = vld [vmem:[#allocation13 + $0x34] sm:$0xf]
    %v1862 = vld [vmem:[#allocation13 + $0x38] sm:$0xf]
    %v1863 = vld [vmem:[#allocation13 + $0x3c] sm:$0xf]
    %v1864 = vld [vmem:[%s12] sm:$0x1]
    %v1866 = vperm.slane %v1864, 0
    %v1884 = vunpack.c.l.b16 %v1832
    %v1885 = vunpack.c.l.b16 %v1833
    %v1886 = vunpack.c.l.b16 %v1834
    %v1887 = vunpack.c.l.b16 %v1835
    %v1888 = vunpack.c.l.b16 %v1836
    %v1889 = vunpack.c.l.b16 %v1837
    %v1890 = vunpack.c.l.b16 %v1838
    %v1891 = vunpack.c.l.b16 %v1839
    %v1892 = vunpack.c.l.b16 %v1840
    %v1893 = vunpack.c.l.b16 %v1841
    %v1894 = vunpack.c.l.b16 %v1842
    %v1895 = vunpack.c.l.b16 %v1843
    %v1896 = vunpack.c.l.b16 %v1844
    %v1897 = vunpack.c.l.b16 %v1845
    %v1898 = vunpack.c.l.b16 %v1846
    %v1899 = vunpack.c.l.b16 %v1847
    %v1900 = vsel %vm528, %v1885, %v1884
    %v1901 = vsel %vm531, %v1886, %v1900
    %v1902 = vsel %vm534, %v1887, %v1901
    %v1903 = vsel %vm537, %v1888, %v1902
    %v1904 = vsel %vm540, %v1889, %v1903
    %v1905 = vsel %vm543, %v1890, %v1904
    %v1906 = vsel %vm546, %v1891, %v1905
    %v1907 = vsel %vm528, %v1893, %v1892
    %v1908 = vsel %vm531, %v1894, %v1907
    %v1909 = vsel %vm534, %v1895, %v1908
    %v1910 = vsel %vm537, %v1896, %v1909
    %v1911 = vsel %vm540, %v1897, %v1910
    %v1912 = vsel %vm543, %v1898, %v1911
    %v1913 = vsel %vm546, %v1899, %v1912
    %v1914 = vpack.c.b16 %v1913, %v1906
    %v1932 = vunpack.c.l.b16 %v1848
    %v1933 = vunpack.c.l.b16 %v1849
    %v1934 = vunpack.c.l.b16 %v1850
    %v1935 = vunpack.c.l.b16 %v1851
    %v1936 = vunpack.c.l.b16 %v1852
    %v1937 = vunpack.c.l.b16 %v1853
    %v1938 = vunpack.c.l.b16 %v1854
    %v1939 = vunpack.c.l.b16 %v1855
    %v1940 = vunpack.c.l.b16 %v1856
    %v1941 = vunpack.c.l.b16 %v1857
    %v1942 = vunpack.c.l.b16 %v1858
    %v1943 = vunpack.c.l.b16 %v1859
    %v1944 = vunpack.c.l.b16 %v1860
    %v1945 = vunpack.c.l.b16 %v1861
    %v1946 = vunpack.c.l.b16 %v1862
    %v1947 = vunpack.c.l.b16 %v1863
    %v1948 = vpack.c.b16 %v1933, %v1932
    %v1949 = vpack.c.b16 %v1935, %v1934
    %v1950 = vpack.c.b16 %v1937, %v1936
    %v1951 = vpack.c.b16 %v1939, %v1938
    %v1952 = vpack.c.b16 %v1941, %v1940
    %v1953 = vpack.c.b16 %v1943, %v1942
    %v1954 = vpack.c.b16 %v1945, %v1944
    %v1955 = vpack.c.b16 %v1947, %v1946
    %1964 = vmatpush.bf16.msra.mxu0 %v1955
    %1965 = vmatpush.bf16.msra.mxu0 %v1954
    %1966 = vmatpush.bf16.msra.mxu0 %v1953
    %1967 = vmatpush.bf16.msra.mxu0 %v1952
    %1968 = vmatpush.bf16.msra.mxu0 %v1951
    %1969 = vmatpush.bf16.msra.mxu0 %v1950
    %1970 = vmatpush.bf16.msra.mxu0 %v1949
    %1971 = vmatpush.bf16.msra.mxu0 %v1948
    %1972 = vmatmul.bf16.gmra.mxu0 %v1914
    %v1973 = vpop.f32.mrf.mxu0
    %v1974 = vadd.f32 %v1866, %v1973
    %v1975 = vpop.f32.mrf.mxu0
    %v1976 = vadd.f32 %v1866, %v1975
    %1977 = vdwg.mxu0
    %v1978 = vmax.f32 %v1974, 0.0
    %v1979 = vmax.f32 %v1976, 0.0
    %v1980 = vmul.f32 %v1069, %v1978
    %v1981 = vmul.f32 %v1071, %v1979
    %v1982 = vpack.c.bf16 %v1981, %v1980
    %v1983 = vld [vmem:[#allocation15] sm:$0xf]
    %v1984 = vld [vmem:[#allocation15 + $0x4] sm:$0xf]
    %v1985 = vld [vmem:[#allocation15 + $0x8] sm:$0xf]
    %v1986 = vld [vmem:[#allocation15 + $0xc] sm:$0xf]
    %v1987 = vld [vmem:[#allocation15 + $0x10] sm:$0xf]
    %v1988 = vld [vmem:[#allocation15 + $0x14] sm:$0xf]
    %v1989 = vld [vmem:[#allocation15 + $0x18] sm:$0xf]
    %v1990 = vld [vmem:[#allocation15 + $0x1c] sm:$0xf]
    %v1991 = vld [vmem:[#allocation15 + $0x20] sm:$0xf]
    %v1992 = vld [vmem:[#allocation15 + $0x24] sm:$0xf]
    %v1993 = vld [vmem:[#allocation15 + $0x28] sm:$0xf]
    %v1994 = vld [vmem:[#allocation15 + $0x2c] sm:$0xf]
    %v1995 = vld [vmem:[#allocation15 + $0x30] sm:$0xf]
    %v1996 = vld [vmem:[#allocation15 + $0x34] sm:$0xf]
    %v1997 = vld [vmem:[#allocation15 + $0x38] sm:$0xf]
    %v1998 = vld [vmem:[#allocation15 + $0x3c] sm:$0xf]
    %v1999 = vld [vmem:[%s14] sm:$0x1]
    %v2001 = vperm.slane %v1999, 0
    %v2019 = vunpack.c.l.b16 %v1983
    %v2020 = vunpack.c.l.b16 %v1984
    %v2021 = vunpack.c.l.b16 %v1985
    %v2022 = vunpack.c.l.b16 %v1986
    %v2023 = vunpack.c.l.b16 %v1987
    %v2024 = vunpack.c.l.b16 %v1988
    %v2025 = vunpack.c.l.b16 %v1989
    %v2026 = vunpack.c.l.b16 %v1990
    %v2027 = vunpack.c.l.b16 %v1991
    %v2028 = vunpack.c.l.b16 %v1992
    %v2029 = vunpack.c.l.b16 %v1993
    %v2030 = vunpack.c.l.b16 %v1994
    %v2031 = vunpack.c.l.b16 %v1995
    %v2032 = vunpack.c.l.b16 %v1996
    %v2033 = vunpack.c.l.b16 %v1997
    %v2034 = vunpack.c.l.b16 %v1998
    %v2035 = vpack.c.b16 %v2020, %v2019
    %v2036 = vpack.c.b16 %v2022, %v2021
    %v2037 = vpack.c.b16 %v2024, %v2023
    %v2038 = vpack.c.b16 %v2026, %v2025
    %v2039 = vpack.c.b16 %v2028, %v2027
    %v2040 = vpack.c.b16 %v2030, %v2029
    %v2041 = vpack.c.b16 %v2032, %v2031
    %v2042 = vpack.c.b16 %v2034, %v2033
    %2051 = vmatpush.bf16.msra.mxu0 %v2042
    %2052 = vmatpush.bf16.msra.mxu0 %v2041
    %2053 = vmatpush.bf16.msra.mxu0 %v2040
    %2054 = vmatpush.bf16.msra.mxu0 %v2039
    %2055 = vmatpush.bf16.msra.mxu0 %v2038
    %2056 = vmatpush.bf16.msra.mxu0 %v2037
    %2057 = vmatpush.bf16.msra.mxu0 %v2036
    %2058 = vmatpush.bf16.msra.mxu0 %v2035
    %2059 = vmatmul.bf16.gmra.mxu0 %v1982
    %v2060 = vpop.f32.mrf.mxu0
    %v2061 = vadd.f32 %v2001, %v2060
    %v2062 = vpop.f32.mrf.mxu0
    %v2063 = vadd.f32 %v2001, %v2062
    %2064 = vdwg.mxu0
    %2065 = vst [vmem:[#allocation16] sm:$0xff] %v2061
    %2066 = vst [vmem:[#allocation16 + $0x8] sm:$0xff] %v2063
    %v2067 = vrot.slane %v1072, 4
    %v2068 = vadd.f32 %v1072, %v2067
    %v2069 = vrot.slane %v2068, 2
    %v2070 = vadd.f32 %v2068, %v2069
    %v2071 = vrot.slane %v2070, 1
    %v2072 = vadd.f32 %v2070, %v2071
    %v2073 = vrot.slane %v1073, 4
    %v2074 = vadd.f32 %v1073, %v2073
    %v2075 = vrot.slane %v2074, 2
    %v2076 = vadd.f32 %v2074, %v2075
    %v2077 = vrot.slane %v2076, 1
    %v2078 = vadd.f32 %v2076, %v2077
    %v2079 = vrot.slane %v1074, 4
    %v2080 = vadd.f32 %v1074, %v2079
    %v2081 = vrot.slane %v2080, 2
    %v2082 = vadd.f32 %v2080, %v2081
    %v2083 = vrot.slane %v2082, 1
    %v2084 = vadd.f32 %v2082, %v2083
    %v2085 = vrot.slane %v1075, 4
    %v2086 = vadd.f32 %v1075, %v2085
    %v2087 = vrot.slane %v2086, 2
    %v2088 = vadd.f32 %v2086, %v2087
    %v2089 = vrot.slane %v2088, 1
    %v2090 = vadd.f32 %v2088, %v2089
    %v2091 = vrot.slane %v1076, 4
    %v2092 = vadd.f32 %v1076, %v2091
    %v2093 = vrot.slane %v2092, 2
    %v2094 = vadd.f32 %v2092, %v2093
    %v2095 = vrot.slane %v2094, 1
    %v2096 = vadd.f32 %v2094, %v2095
    %v2097 = vrot.slane %v1077, 4
    %v2098 = vadd.f32 %v1077, %v2097
    %v2099 = vrot.slane %v2098, 2
    %v2100 = vadd.f32 %v2098, %v2099
    %v2101 = vrot.slane %v2100, 1
    %v2102 = vadd.f32 %v2100, %v2101
    %v2103 = vrot.slane %v1078, 4
    %v2104 = vadd.f32 %v1078, %v2103
    %v2105 = vrot.slane %v2104, 2
    %v2106 = vadd.f32 %v2104, %v2105
    %v2107 = vrot.slane %v2106, 1
    %v2108 = vadd.f32 %v2106, %v2107
    %v2109 = vrot.slane %v1079, 4
    %v2110 = vadd.f32 %v1079, %v2109
    %v2111 = vrot.slane %v2110, 2
    %v2112 = vadd.f32 %v2110, %v2111
    %v2113 = vrot.slane %v2112, 1
    %v2114 = vadd.f32 %v2112, %v2113
    %v2115 = vrot.slane %v1080, 4
    %v2116 = vadd.f32 %v1080, %v2115
    %v2117 = vrot.slane %v2116, 2
    %v2118 = vadd.f32 %v2116, %v2117
    %v2119 = vrot.slane %v2118, 1
    %v2120 = vadd.f32 %v2118, %v2119
    %v2121 = vrot.slane %v1081, 4
    %v2122 = vadd.f32 %v1081, %v2121
    %v2123 = vrot.slane %v2122, 2
    %v2124 = vadd.f32 %v2122, %v2123
    %v2125 = vrot.slane %v2124, 1
    %v2126 = vadd.f32 %v2124, %v2125
    %v2127 = vrot.slane %v1082, 4
    %v2128 = vadd.f32 %v1082, %v2127
    %v2129 = vrot.slane %v2128, 2
    %v2130 = vadd.f32 %v2128, %v2129
    %v2131 = vrot.slane %v2130, 1
    %v2132 = vadd.f32 %v2130, %v2131
    %v2133 = vrot.slane %v1083, 4
    %v2134 = vadd.f32 %v1083, %v2133
    %v2135 = vrot.slane %v2134, 2
    %v2136 = vadd.f32 %v2134, %v2135
    %v2137 = vrot.slane %v2136, 1
    %v2138 = vadd.f32 %v2136, %v2137
    %v2139 = vrot.slane %v1084, 4
    %v2140 = vadd.f32 %v1084, %v2139
    %v2141 = vrot.slane %v2140, 2
    %v2142 = vadd.f32 %v2140, %v2141
    %v2143 = vrot.slane %v2142, 1
    %v2144 = vadd.f32 %v2142, %v2143
    %v2145 = vrot.slane %v1085, 4
    %v2146 = vadd.f32 %v1085, %v2145
    %v2147 = vrot.slane %v2146, 2
    %v2148 = vadd.f32 %v2146, %v2147
    %v2149 = vrot.slane %v2148, 1
    %v2150 = vadd.f32 %v2148, %v2149
    %v2151 = vrot.slane %v1086, 4
    %v2152 = vadd.f32 %v1086, %v2151
    %v2153 = vrot.slane %v2152, 2
    %v2154 = vadd.f32 %v2152, %v2153
    %v2155 = vrot.slane %v2154, 1
    %v2156 = vadd.f32 %v2154, %v2155
    %v2157 = vrot.slane %v1087, 4
    %v2158 = vadd.f32 %v1087, %v2157
    %v2159 = vrot.slane %v2158, 2
    %v2160 = vadd.f32 %v2158, %v2159
    %v2161 = vrot.slane %v2160, 1
    %v2162 = vadd.f32 %v2160, %v2161
    %v2179 = vsel %vm528, %v2078, %v2072
    %v2180 = vsel %vm531, %v2084, %v2179
    %v2181 = vsel %vm534, %v2090, %v2180
    %v2182 = vsel %vm537, %v2096, %v2181
    %v2183 = vsel %vm540, %v2102, %v2182
    %v2184 = vsel %vm543, %v2108, %v2183
    %v2185 = vsel %vm546, %v2114, %v2184
    %v2186 = vsel %vm528, %v2126, %v2120
    %v2187 = vsel %vm531, %v2132, %v2186
    %v2188 = vsel %vm534, %v2138, %v2187
    %v2189 = vsel %vm537, %v2144, %v2188
    %v2190 = vsel %vm540, %v2150, %v2189
    %v2191 = vsel %vm543, %v2156, %v2190
    %v2192 = vsel %vm546, %v2162, %v2191
    %2195 = vst [vmem:[#allocation17] sm:$0xff] %v2185
    %2196 = vst [vmem:[#allocation17 + $0x8] sm:$0xff] %v2192
    %2197 = vst [vmem:[#allocation19] sm:$0xff] %v1069
    %2198 = vst [vmem:[#allocation19 + $0x8] sm:$0xff] %v1071
    // Predicated region
    $region90: #{tpu_custom_call.1} parent=1 // pred_check
      _
    $region91: #{tpu_custom_call.1} parent=1 // pred_check_branch
      %2200 = sbr.rel (0) target = $region93
    $region92: #{tpu_custom_call.1} parent=1 // pred_region
      %2202 = vsyncadd [#allocation6], 0
      %s2203 = sshll.u32 [#allocation16], 4
      %s2204 = int_to_ptr.vmem [resolvable:$true] %s2203
      %s2205 = sshll.u32 %s15, 4
      %s2206 = int_to_ptr.hbm [resolvable:$true] %s2205
      %2211 = dma.vmem_to_hbm [thread:$0]  %s2204, 256, %s2206, [#allocation6], 128, 128, 8
    $region93: #{tpu_custom_call.1} parent=1 // pred_fallthru
      _
    // Predicated region
    $region94: #{tpu_custom_call.1} parent=1 // pred_check
      _
    $region95: #{tpu_custom_call.1} parent=1 // pred_check_branch
      %2213 = sbr.rel (0) target = $region97
    $region96: #{tpu_custom_call.1} parent=1 // pred_region
      %2215 = vsyncadd [#allocation18], 0
      %s2216 = sshll.u32 [#allocation17], 4
      %s2217 = int_to_ptr.vmem [resolvable:$true] %s2216
      %s2218 = sshll.u32 %s16, 4
      %s2219 = int_to_ptr.hbm [resolvable:$true] %s2218
      %2224 = dma.vmem_to_hbm [thread:$0]  %s2217, 256, %s2219, [#allocation18], 128, 128, 8
    $region97: #{tpu_custom_call.1} parent=1 // pred_fallthru
      _
    // Predicated region
    $region98: #{tpu_custom_call.1} parent=1 // pred_check
      _
    $region99: #{tpu_custom_call.1} parent=1 // pred_check_branch
      %2226 = sbr.rel (0) target = $region101
    $region100: #{tpu_custom_call.1} parent=1 // pred_region
      %2228 = vsyncadd [#allocation18], 0
      %s2229 = sshll.u32 [#allocation19], 4
      %s2230 = int_to_ptr.vmem [resolvable:$true] %s2229
      %s2231 = sshll.u32 %s17, 4
      %s2232 = int_to_ptr.hbm [resolvable:$true] %s2231
      %2237 = dma.vmem_to_hbm [thread:$0]  %s2230, 256, %s2232, [#allocation18], 128, 128, 8
    $region101: #{tpu_custom_call.1} parent=1 // pred_fallthru
      _
    // Predicated region
    $region102: #{tpu_custom_call.1} parent=1 // pred_check
      _
    $region103: #{tpu_custom_call.1} parent=1 // pred_check_branch
      %2239 = sbr.rel (0) target = $region105
    $region104: #{tpu_custom_call.1} parent=1 // pred_region
      %2241 = dma.done [#allocation6], 256
    $region105: #{tpu_custom_call.1} parent=1 // pred_fallthru
      _
    // Predicated region
    $region106: #{tpu_custom_call.1} parent=1 // pred_check
      _
    $region107: #{tpu_custom_call.1} parent=1 // pred_check_branch
      %2243 = sbr.rel (0) target = $region109
    $region108: #{tpu_custom_call.1} parent=1 // pred_region
      %2245 = dma.done [#allocation18], 256
    $region109: #{tpu_custom_call.1} parent=1 // pred_fallthru
      _
    // Predicated region
    $region110: #{tpu_custom_call.1} parent=1 // pred_check
      _
    $region111: #{tpu_custom_call.1} parent=1 // pred_check_branch
      %2247 = sbr.rel (0) target = $region113
    $region112: #{tpu_custom_call.1} parent=1 // pred_region
      %2249 = dma.done [#allocation18], 256
    $region113: #{tpu_custom_call.1} parent=1 // pred_fallthru
      _
    %2250 = vsyncpa [#allocation5], 1
    %2251 = vsyncpa [#allocation8], 1
    %2252 = vsyncpa [#allocation11], 1
    %2253 = vsyncpa [#allocation14], 1
    %2254 = vsyncpa [#allocation6], 1
    %2255 = vsyncpa [#allocation18], 1

</llo_original>
